<compile_context>
chip_gen: v7x
topology: tpu7x:2x2x1
jax: 0.10.0
libtpu: 0.0.40
codegen_flags: <defaults>
</compile_context>

<pallas_src>
import functools

import jax
import jax.numpy as jnp
from jax.experimental import pallas as pl
from jax.experimental.pallas import tpu as pltpu

LANE = 128
_NEG_INF = -1e30
_TILED_VMEM_LIMIT = 32 * 1024 * 1024
_DEFAULT_VMEM_CAP = 64 * 1024 * 1024       # conservative fallback (v7x)


def _round_up(x, m):
    return (x + m - 1) // m * m


def _pad2(x, rows, cols):
    r, c = x.shape
    return jnp.pad(x, ((0, rows - r), (0, cols - c)))


def _vmem_capacity_bytes():
    """Generation-aware VMEM capacity (v5e/v6e: 128 MiB, v7x: 64 MiB)."""
    try:
        info = pltpu.get_tpu_info()
        cap = getattr(info, "vmem_capacity_bytes", None)
        if cap:
            return int(cap)
    except Exception:
        pass
    return _DEFAULT_VMEM_CAP


def _has_multiple_tensorcores():
    """Heuristic: v7x has 2 TensorCores per chip; v5e/v6e have 1."""
    try:
        kind = jax.devices()[0].device_kind.lower()
        return "v7" in kind
    except Exception:
        return False


def _pick_tile(n_p):
    for t in (512, 256, 128):
        if n_p % t == 0:
            return t
    return LANE


def _masked_log_softmax(h, num_classes):
    """log_softmax over the lane (class) axis ignoring padded class columns."""
    cols = jax.lax.broadcasted_iota(jnp.int32, h.shape, 1)
    valid = cols < num_classes
    h = jnp.where(valid, h, _NEG_INF)
    m = jnp.max(h, axis=1, keepdims=True)
    s = h - m
    e = jnp.where(valid, jnp.exp(s), 0.0)
    return s - jnp.log(jnp.sum(e, axis=1, keepdims=True))


# ----------------------------------------------------------------------------
# Fused kernel (small / mid graphs): A resident in VMEM across all three GCN
# layers, fetched once from HBM via a manual DMA that overlaps x @ W1.
#   h1 = relu(A @ (x  @ W1) + b1)
#   h2 = relu(A @ (h1 @ W2) + b2)
#   h3 =      A @ (h2 @ W3) + b3
#   out = masked_log_softmax(h3)
# ----------------------------------------------------------------------------
def _fused_kernel(num_classes, a_hbm, x_ref,
                  w1_ref, b1_ref, w2_ref, b2_ref, w3_ref, b3_ref,
                  o_ref, a_vmem, a_sem):
    cp = pltpu.make_async_copy(a_hbm, a_vmem, a_sem)
    cp.start()

    # layer-1 feature transform does not need A: overlap it with the A DMA.
    xw = jnp.dot(x_ref[...], w1_ref[...],
                 preferred_element_type=jnp.float32).astype(jnp.bfloat16)

    cp.wait()
    a = a_vmem[...]                                  # [Np, Np] bf16

    # layer 1
    h = jnp.dot(a, xw, preferred_element_type=jnp.float32)
    h = jnp.maximum(h + b1_ref[...], 0.0)

    # layer 2
    xw = jnp.dot(h.astype(jnp.bfloat16), w2_ref[...],
                 preferred_element_type=jnp.float32).astype(jnp.bfloat16)
    h = jnp.dot(a, xw, preferred_element_type=jnp.float32)
    h = jnp.maximum(h + b2_ref[...], 0.0)

    # layer 3
    xw = jnp.dot(h.astype(jnp.bfloat16), w3_ref[...],
                 preferred_element_type=jnp.float32).astype(jnp.bfloat16)
    h = jnp.dot(a, xw, preferred_element_type=jnp.float32) + b3_ref[...]

    o_ref[...] = _masked_log_softmax(h, num_classes).astype(o_ref.dtype)


def _fused_forward(x_bf, a_bf, pp, num_classes, vmem_limit):
    n_p = a_bf.shape[0]
    cin_p = x_bf.shape[1]
    hid_p = pp["w1"].shape[1]
    cout_p = pp["w3"].shape[1]

    flops = 2 * n_p * (cin_p * hid_p + hid_p * hid_p + hid_p * cout_p) \
        + 2 * n_p * n_p * (2 * hid_p + cout_p)
    bytes_accessed = 2 * (n_p * n_p + n_p * cin_p + cin_p * hid_p
                          + hid_p * hid_p + hid_p * cout_p) \
        + 4 * (2 * hid_p + cout_p) + 4 * n_p * cout_p

    vmem_spec = pl.BlockSpec(memory_space=pltpu.MemorySpace.VMEM)
    return pl.pallas_call(
        functools.partial(_fused_kernel, num_classes),
        out_shape=jax.ShapeDtypeStruct((n_p, cout_p), jnp.float32),
        in_specs=[pl.BlockSpec(memory_space=pl.ANY)] + [vmem_spec] * 7,
        out_specs=vmem_spec,
        scratch_shapes=[pltpu.VMEM((n_p, n_p), jnp.bfloat16),
                        pltpu.SemaphoreType.DMA],
        compiler_params=pltpu.CompilerParams(vmem_limit_bytes=int(vmem_limit)),
        cost_estimate=pl.CostEstimate(
            flops=int(flops),
            transcendentals=int(n_p * cout_p + n_p),
            bytes_accessed=int(bytes_accessed)),
    )(a_bf, x_bf,
      pp["w1"], pp["b1"], pp["w2"], pp["b2"], pp["w3"], pp["b3"])


# ----------------------------------------------------------------------------
# Tiled path (large graphs): one kernel per GCN layer.
#   Y = A @ (H @ W) + b  (+ ReLU / masked log_softmax epilogue)
# gridded over (row tiles i, contraction tiles k) with an f32 VMEM accumulator.
# A is the only operand streamed at O(n^2) bytes; the (tk, c_out) XW tile is
# recomputed on the MXU from the (tk, c_in) H tile and the resident W.
# ----------------------------------------------------------------------------
def _layer_kernel(num_classes, activation,
                  a_ref, h_ref, w_ref, b_ref, o_ref, acc_ref):
    k = pl.program_id(1)

    @pl.when(k == 0)
    def _():
        acc_ref[...] = jnp.zeros_like(acc_ref)

    xw = jnp.dot(h_ref[...], w_ref[...],
                 preferred_element_type=jnp.float32).astype(jnp.bfloat16)
    acc_ref[...] += jnp.dot(a_ref[...], xw,
                            preferred_element_type=jnp.float32)

    @pl.when(k == pl.num_programs(1) - 1)
    def _():
        h = acc_ref[...] + b_ref[...]
        if activation == "relu":
            h = jnp.maximum(h, 0.0)
        elif activation == "log_softmax":
            h = _masked_log_softmax(h, num_classes)
        o_ref[...] = h.astype(o_ref.dtype)


def _gcn_layer(h_bf, a_bf, w_bf, b_f32, activation, num_classes,
               tm, tk, out_dtype):
    n_p = a_bf.shape[0]
    c_in = w_bf.shape[0]
    c_out = w_bf.shape[1]

    out_bytes = jnp.dtype(out_dtype).itemsize
    trans = n_p * c_out + n_p if activation == "log_softmax" else 0
    flops = 2 * n_p * n_p * c_out + 2 * n_p * n_p * c_in * c_out // tm
    bytes_accessed = (2 * n_p * n_p                       # A, streamed once
                      + 2 * n_p * c_in * (n_p // tm)      # H, refetched per row tile
                      + 2 * c_in * c_out + 4 * c_out      # W, bias (resident)
                      + out_bytes * n_p * c_out)

    return pl.pallas_call(
        functools.partial(_layer_kernel, num_classes, activation),
        out_shape=jax.ShapeDtypeStruct((n_p, c_out), out_dtype),
        grid_spec=pltpu.PrefetchScalarGridSpec(
            num_scalar_prefetch=0,
            grid=(n_p // tm, n_p // tk),
            in_specs=[pl.BlockSpec((tm, tk), lambda i, k: (i, k)),      # A tile
                      pl.BlockSpec((tk, c_in), lambda i, k: (k, 0)),    # H tile
                      pl.BlockSpec((c_in, c_out), lambda i, k: (0, 0)), # W (resident)
                      pl.BlockSpec((1, c_out), lambda i, k: (0, 0))],   # bias
            out_specs=pl.BlockSpec((tm, c_out), lambda i, k: (i, 0)),
            scratch_shapes=[pltpu.VMEM((tm, c_out), jnp.float32)]),
        compiler_params=pltpu.CompilerParams(
            dimension_semantics=("parallel", "arbitrary"),
            vmem_limit_bytes=_TILED_VMEM_LIMIT),
        cost_estimate=pl.CostEstimate(
            flops=int(flops),
            transcendentals=int(trans),
            bytes_accessed=int(bytes_accessed)),
    )(a_bf, h_bf, w_bf, b_f32)


# ----------------------------------------------------------------------------
# Wrapper: padding, bf16 casts, fused-vs-tiled dispatch, final slice.
# ----------------------------------------------------------------------------
def teacher_gnn_forward(x, a_norm, params, *, force_tiled=False,
                        tm=None, tk=None, node_pad=None):
    n, cin = x.shape
    hid = params["w1"].shape[1]
    cout = params["w3"].shape[1]

    cin_p = _round_up(cin, LANE)
    hid_p = _round_up(hid, LANE)
    cout_p = _round_up(cout, LANE)
    # Node padding is a layout requirement only (128); tile sizes are chosen
    # afterwards as divisors of n_p so big tiles never inflate A.
    n_p = _round_up(max(n, node_pad or n), LANE)

    a_bf = _pad2(a_norm, n_p, n_p).astype(jnp.bfloat16)
    x_bf = _pad2(x, n_p, cin_p).astype(jnp.bfloat16)
    pp = {
        "w1": _pad2(params["w1"], cin_p, hid_p).astype(jnp.bfloat16),
        "b1": _pad2(params["b1"], 1, hid_p).astype(jnp.float32),
        "w2": _pad2(params["w2"], hid_p, hid_p).astype(jnp.bfloat16),
        "b2": _pad2(params["b2"], 1, hid_p).astype(jnp.float32),
        "w3": _pad2(params["w3"], hid_p, cout_p).astype(jnp.bfloat16),
        "b3": _pad2(params["b3"], 1, cout_p).astype(jnp.float32),
    }

    # Generation-aware VMEM budgets: ~60% of capacity for the A-resident fused
    # dispatch, ~75% for the scoped limit (v7x 64 MiB vs v5e/v6e 128 MiB).
    vmem_cap = _vmem_capacity_bytes()
    fused_budget = int(vmem_cap * 0.60)
    fused_limit = int(vmem_cap * 0.75)

    fused_bytes = (2 * n_p * n_p + 2 * n_p * cin_p
                   + 4 * 3 * n_p * max(hid_p, cout_p) + 4 * n_p * cout_p)

    # On v7x (2 TensorCores) route mid/large graphs to the tiled path so the
    # "parallel" row axis shards across both cores.
    multicore_tiled = _has_multiple_tensorcores() and n_p >= 2048

    use_fused = ((not force_tiled) and (not multicore_tiled)
                 and fused_bytes <= fused_budget)

    if use_fused:
        out = _fused_forward(x_bf, a_bf, pp, cout, fused_limit)
    else:
        tm_ = tm if tm is not None else _pick_tile(n_p)
        tk_ = tk if tk is not None else _pick_tile(n_p)
        # TODO(synk): inter-layer H kept bf16; switch to f32 if these teacher
        # logits feed a distillation KL loss and tighter accuracy is needed.
        h = _gcn_layer(x_bf, a_bf, pp["w1"], pp["b1"], "relu", cout,
                       tm_, tk_, jnp.bfloat16)
        h = _gcn_layer(h, a_bf, pp["w2"], pp["b2"], "relu", cout,
                       tm_, tk_, jnp.bfloat16)
        out = _gcn_layer(h, a_bf, pp["w3"], pp["b3"], "log_softmax", cout,
                         tm_, tk_, jnp.float32)

    return out[:n, :cout]


# ----------------------------------------------------------------------------
# Glue: dense normalized adjacency (GCNConv semantics: self-loops + sym norm),
# parameter init, and an f32 pure-JAX reference for validation.
# ----------------------------------------------------------------------------
def build_normalized_adjacency(edge_index, num_nodes):
    src, dst = edge_index[0], edge_index[1]
    a = jnp.zeros((num_nodes, num_nodes), jnp.float32)
    a = a.at[dst, src].add(1.0)                                  # message j -> i
    a_hat = a + jnp.eye(num_nodes, dtype=jnp.float32)            # self loops
    deg = jnp.sum(a_hat, axis=1)
    d_inv_sqrt = jnp.where(deg > 0, 1.0 / jnp.sqrt(deg), 0.0)
    return d_inv_sqrt[:, None] * a_hat * d_inv_sqrt[None, :]


def init_params(key, in_channels, hidden_channels, out_channels):
    k1, k2, k3 = jax.random.split(key, 3)

    def glorot(k, fan_in, fan_out):
        scale = jnp.sqrt(6.0 / (fan_in + fan_out))
        return jax.random.uniform(k, (fan_in, fan_out), jnp.float32, -scale, scale)

    return {
        "w1": glorot(k1, in_channels, hidden_channels),
        "b1": jnp.zeros((1, hidden_channels), jnp.float32),
        "w2": glorot(k2, hidden_channels, hidden_channels),
        "b2": jnp.zeros((1, hidden_channels), jnp.float32),
        "w3": glorot(k3, hidden_channels, out_channels),
        "b3": jnp.zeros((1, out_channels), jnp.float32),
    }


def reference_forward(x, a, params):
    h = jnp.maximum(a @ (x @ params["w1"]) + params["b1"], 0.0)
    h = jnp.maximum(a @ (h @ params["w2"]) + params["b2"], 0.0)
    h = a @ (h @ params["w3"]) + params["b3"]
    return jax.nn.log_softmax(h, axis=1)


if __name__ == "__main__":
    # Small deterministic problem: 8 nodes, 16 input features, 32 hidden, 8 classes.
    num_nodes = 8
    in_channels, hidden_channels, out_channels = 16, 32, 8

    key = jax.random.PRNGKey(0)
    k_x, k_p = jax.random.split(key)
    x = jax.random.normal(k_x, (num_nodes, in_channels), jnp.float32)

    # Undirected ring graph (both directions) + one chord.
    src = jnp.array([0, 1, 1, 2, 2, 3, 3, 4, 4, 5, 5, 6, 6, 7, 7, 0, 0, 3],
                    dtype=jnp.int32)
    dst = jnp.array([1, 0, 2, 1, 3, 2, 4, 3, 5, 4, 6, 5, 7, 6, 0, 7, 3, 0],
                    dtype=jnp.int32)
    edge_index = jnp.stack([src, dst], axis=0)

    a_norm = build_normalized_adjacency(edge_index, num_nodes)
    params = init_params(k_p, in_channels, hidden_channels, out_channels)

    # Small-graph path: fused, A resident in VMEM (manual DMA overlapped with x@W1).
    out_fused = teacher_gnn_forward(x, a_norm, params)
    jax.block_until_ready(out_fused)

    # Also exercise the tiled / gridded path that large graphs dispatch to
    # (padded to 1024 nodes -> auto 512x512 tiles -> 2x2 grid with an
    # accumulated contraction axis and in-kernel H@W recompute).
    out_tiled = teacher_gnn_forward(x, a_norm, params, force_tiled=True,
                                    node_pad=1024)
    jax.block_until_ready(out_tiled)

    ref = reference_forward(x, a_norm, params)

    assert out_fused.shape == (num_nodes, out_channels)
    row_sums = jnp.sum(jnp.exp(out_fused), axis=1)
    assert bool(jnp.all(jnp.abs(row_sums - 1.0) < 1e-3))
    # bf16 MXU inputs with f32 accumulation: loose tolerance vs f32 reference.
    assert bool(jnp.max(jnp.abs(out_fused - ref)) < 1e-1)
    assert bool(jnp.max(jnp.abs(out_tiled - out_fused)) < 5e-2)

    print("KERNEL_OK")
</pallas_src>

<mosaic_0001>
module attributes {stable_mosaic.version = 11 : i64} {
  func.func @_fused_kernel(%arg0: memref<128x128xbf16, #tpu.memory_space<any>>, %arg1: memref<128x128xbf16, #tpu.memory_space<vmem>>, %arg2: memref<128x128xbf16, #tpu.memory_space<vmem>>, %arg3: memref<1x128xf32, #tpu.memory_space<vmem>>, %arg4: memref<128x128xbf16, #tpu.memory_space<vmem>>, %arg5: memref<1x128xf32, #tpu.memory_space<vmem>>, %arg6: memref<128x128xbf16, #tpu.memory_space<vmem>>, %arg7: memref<1x128xf32, #tpu.memory_space<vmem>>, %arg8: memref<128x128xf32, #tpu.memory_space<vmem>>, %arg9: memref<128x128xbf16, #tpu.memory_space<vmem>>, %arg10: memref<!tpu.dma_semaphore, #tpu.memory_space<semaphore_mem>>) attributes {dimension_semantics = [], scalar_prefetch = 0 : i64, scratch_operands = 2 : i64, tpu.core_type = #tpu.core_type<tc>} {
    tpu.enqueue_dma source(%arg0 : memref<128x128xbf16, #tpu.memory_space<any>>) target(%arg9 : memref<128x128xbf16, #tpu.memory_space<vmem>>) target_semaphore(%arg10 : memref<!tpu.dma_semaphore, #tpu.memory_space<semaphore_mem>>)
    %c0 = arith.constant 0 : index
    %c0_0 = arith.constant 0 : index
    %0 = vector.load %arg1[%c0, %c0_0] : memref<128x128xbf16, #tpu.memory_space<vmem>>, vector<128x128xbf16>
    %c0_1 = arith.constant 0 : index
    %c0_2 = arith.constant 0 : index
    %1 = vector.load %arg2[%c0_1, %c0_2] : memref<128x128xbf16, #tpu.memory_space<vmem>>, vector<128x128xbf16>
    %cst = arith.constant dense<0.000000e+00> : vector<128x128xf32>
    %2 = tpu.matmul %0, %1, %cst {dimension_numbers = #tpu.dot_dimension_numbers<[1], [0], [0], [1], [0, 0, 1, 1], [], []>} : vector<128x128xbf16>, vector<128x128xbf16>, vector<128x128xf32> -> vector<128x128xf32>
    %3 = arith.truncf %2 : vector<128x128xf32> to vector<128x128xbf16>
    tpu.wait_dma2 semaphore(%arg10 : memref<!tpu.dma_semaphore, #tpu.memory_space<semaphore_mem>>) src(%arg0 : memref<128x128xbf16, #tpu.memory_space<any>>) dst(%arg9 : memref<128x128xbf16, #tpu.memory_space<vmem>>)
    %c0_3 = arith.constant 0 : index
    %c0_4 = arith.constant 0 : index
    %4 = vector.load %arg9[%c0_3, %c0_4] : memref<128x128xbf16, #tpu.memory_space<vmem>>, vector<128x128xbf16>
    %cst_5 = arith.constant dense<0.000000e+00> : vector<128x128xf32>
    %5 = tpu.matmul %4, %3, %cst_5 {dimension_numbers = #tpu.dot_dimension_numbers<[1], [0], [0], [1], [0, 0, 1, 1], [], []>} : vector<128x128xbf16>, vector<128x128xbf16>, vector<128x128xf32> -> vector<128x128xf32>
    %c0_6 = arith.constant 0 : index
    %c0_7 = arith.constant 0 : index
    %6 = vector.load %arg3[%c0_6, %c0_7] : memref<1x128xf32, #tpu.memory_space<vmem>>, vector<1x128xf32>
    %7 = vector.broadcast %6 : vector<1x128xf32> to vector<128x128xf32>
    %8 = arith.addf %5, %7 : vector<128x128xf32>
    %cst_8 = arith.constant 0.000000e+00 : f32
    %9 = vector.broadcast %cst_8 : f32 to vector<128x128xf32>
    %10 = arith.maximumf %8, %9 : vector<128x128xf32>
    %11 = arith.truncf %10 : vector<128x128xf32> to vector<128x128xbf16>
    %c0_9 = arith.constant 0 : index
    %c0_10 = arith.constant 0 : index
    %12 = vector.load %arg4[%c0_9, %c0_10] : memref<128x128xbf16, #tpu.memory_space<vmem>>, vector<128x128xbf16>
    %cst_11 = arith.constant dense<0.000000e+00> : vector<128x128xf32>
    %13 = tpu.matmul %11, %12, %cst_11 {dimension_numbers = #tpu.dot_dimension_numbers<[1], [0], [0], [1], [0, 0, 1, 1], [], []>} : vector<128x128xbf16>, vector<128x128xbf16>, vector<128x128xf32> -> vector<128x128xf32>
    %14 = arith.truncf %13 : vector<128x128xf32> to vector<128x128xbf16>
    %cst_12 = arith.constant dense<0.000000e+00> : vector<128x128xf32>
    %15 = tpu.matmul %4, %14, %cst_12 {dimension_numbers = #tpu.dot_dimension_numbers<[1], [0], [0], [1], [0, 0, 1, 1], [], []>} : vector<128x128xbf16>, vector<128x128xbf16>, vector<128x128xf32> -> vector<128x128xf32>
    %c0_13 = arith.constant 0 : index
    %c0_14 = arith.constant 0 : index
    %16 = vector.load %arg5[%c0_13, %c0_14] : memref<1x128xf32, #tpu.memory_space<vmem>>, vector<1x128xf32>
    %17 = vector.broadcast %16 : vector<1x128xf32> to vector<128x128xf32>
    %18 = arith.addf %15, %17 : vector<128x128xf32>
    %cst_15 = arith.constant 0.000000e+00 : f32
    %19 = vector.broadcast %cst_15 : f32 to vector<128x128xf32>
    %20 = arith.maximumf %18, %19 : vector<128x128xf32>
    %21 = arith.truncf %20 : vector<128x128xf32> to vector<128x128xbf16>
    %c0_16 = arith.constant 0 : index
    %c0_17 = arith.constant 0 : index
    %22 = vector.load %arg6[%c0_16, %c0_17] : memref<128x128xbf16, #tpu.memory_space<vmem>>, vector<128x128xbf16>
    %cst_18 = arith.constant dense<0.000000e+00> : vector<128x128xf32>
    %23 = tpu.matmul %21, %22, %cst_18 {dimension_numbers = #tpu.dot_dimension_numbers<[1], [0], [0], [1], [0, 0, 1, 1], [], []>} : vector<128x128xbf16>, vector<128x128xbf16>, vector<128x128xf32> -> vector<128x128xf32>
    %24 = arith.truncf %23 : vector<128x128xf32> to vector<128x128xbf16>
    %cst_19 = arith.constant dense<0.000000e+00> : vector<128x128xf32>
    %25 = tpu.matmul %4, %24, %cst_19 {dimension_numbers = #tpu.dot_dimension_numbers<[1], [0], [0], [1], [0, 0, 1, 1], [], []>} : vector<128x128xbf16>, vector<128x128xbf16>, vector<128x128xf32> -> vector<128x128xf32>
    %c0_20 = arith.constant 0 : index
    %c0_21 = arith.constant 0 : index
    %26 = vector.load %arg7[%c0_20, %c0_21] : memref<1x128xf32, #tpu.memory_space<vmem>>, vector<1x128xf32>
    %27 = vector.broadcast %26 : vector<1x128xf32> to vector<128x128xf32>
    %28 = arith.addf %25, %27 : vector<128x128xf32>
    %29 = tpu.iota {dimensions = array<i32: 1>} : vector<128x128xi32>
    %c8_i32 = arith.constant 8 : i32
    %30 = vector.broadcast %c8_i32 : i32 to vector<128x128xi32>
    %31 = arith.cmpi slt, %29, %30 : vector<128x128xi32>
    %cst_22 = arith.constant -1.000000e+30 : f32
    %32 = vector.broadcast %cst_22 : f32 to vector<128x128xf32>
    %33 = arith.select %31, %28, %32 : vector<128x128xi1>, vector<128x128xf32>
    %cst_23 = arith.constant dense<0xFF800000> : vector<128xf32>
    %34 = vector.multi_reduction <maximumf>, %33, %cst_23 [1] : vector<128x128xf32> to vector<128xf32>
    %35 = vector.shape_cast %34 : vector<128xf32> to vector<128x1xf32>
    %36 = vector.broadcast %35 : vector<128x1xf32> to vector<128x128xf32>
    %37 = arith.subf %33, %36 : vector<128x128xf32>
    %38 = math.exp %37 : vector<128x128xf32>
    %cst_24 = arith.constant 0.000000e+00 : f32
    %39 = vector.broadcast %cst_24 : f32 to vector<128x128xf32>
    %40 = arith.select %31, %38, %39 : vector<128x128xi1>, vector<128x128xf32>
    %cst_25 = arith.constant dense<0.000000e+00> : vector<128xf32>
    %41 = vector.multi_reduction <add>, %40, %cst_25 [1] : vector<128x128xf32> to vector<128xf32>
    %42 = vector.shape_cast %41 : vector<128xf32> to vector<128x1xf32>
    %43 = math.log %42 : vector<128x1xf32>
    %44 = vector.broadcast %43 : vector<128x1xf32> to vector<128x128xf32>
    %45 = arith.subf %37, %44 : vector<128x128xf32>
    %c0_26 = arith.constant 0 : index
    %c0_27 = arith.constant 0 : index
    %46 = vector.load %arg8[%c0_26, %c0_27] : memref<128x128xf32, #tpu.memory_space<vmem>>, vector<128x128xf32>
    tpu.vector_store %arg8[%c0_26, %c0_27], %45 {strides = array<i32>} : memref<128x128xf32, #tpu.memory_space<vmem>>, vector<128x128xf32>,
    return
  }
}

</mosaic_0001>

<llo_original>
// kernel: tpu_custom_call.1
$region0: #{tpu_custom_call.1}
  #allocation0 [shape = 'u32[]', space=smem, size = 0x4, offset = 0x4, fixed_abs, tag = 'smem constant byte address 0x4 - core index']
  #allocation1 [shape = 'u32[144,128]{1,0:T(1,128)}', space=vmem, size = 0x12000, scoped, tag = 'internal scratch']
  #allocation2 [shape = 'bf16[128,128]{1,0:T(16,128)(2,1)}', space=vmem, size = 0x8000, scoped, tag = 'scratch operand']
  #allocation3 [shape = 's32[1]{0}', space=sflag, size = 0x4, scoped, tag = 'scratch operand']
  #allocation13 [shape = 's32[]', space=sflag, size = 0x4, offset = 0, fixed_abs, tag = 'sflag constant byte address 0x0 - dummy sync flag']
  #allocation14 [shape = 's32[]', space=sflag, size = 0x4, offset = 0, fixed_abs, tag = 'sflag constant byte address 0x0 - dummy sync flag']
  #allocation15 [shape = 'u32[]', space=smem, size = 0x4, offset = 0x44, fixed_abs, tag = 'smem constant byte address 0x44 - assertion arg 0']
  #allocation16 [shape = 'u32[]', space=smem, size = 0x4, offset = 0x48, fixed_abs, tag = 'smem constant byte address 0x48 - assertion arg 1']
  %s0 = inlined_call_operand.hbm [shape: bf16[128,128], index: 0, kind: input, shape index: {}]
  %s1 = inlined_call_operand.hbm [shape: bf16[128,128], index: 1, kind: input, shape index: {}]
  %s2 = inlined_call_operand.hbm [shape: bf16[128,128], index: 2, kind: input, shape index: {}]
  %s3 = inlined_call_operand.vmem [shape: f32[1,128], index: 3, kind: input, shape index: {}]
  %s4 = inlined_call_operand.hbm [shape: bf16[128,128], index: 4, kind: input, shape index: {}]
  %s5 = inlined_call_operand.vmem [shape: f32[1,128], index: 5, kind: input, shape index: {}]
  %s6 = inlined_call_operand.hbm [shape: bf16[128,128], index: 6, kind: input, shape index: {}]
  %s7 = inlined_call_operand.vmem [shape: f32[1,128], index: 7, kind: input, shape index: {}]
  %s8 = inlined_call_operand.hbm [shape: f32[128,128], index: 8, kind: output, shape index: {}]
  %s9 = sld [smem:[#allocation0]]
  $region58: #{tpu_custom_call.1} parent=0
    _
  %s11 = ssub.s32 1, %s9
  %s12 = scalar_select 0, %s11, %s9
  $region1: #{tpu_custom_call.1} parent=0
    #allocation4 [shape = 'u8[32768]{0}', space=vmem, size = 0x8000, scoped, tag = 'input window, operand 1, single buffered']
    #allocation5 [shape = 's32[1]{0}', space=sflag, size = 0x4, scoped, tag = 'scoped memory for tpu_custom_call.1']
    #allocation6 [shape = 's32[1]{0}', space=sflag, size = 0x4, scoped, tag = 'scoped memory for tpu_custom_call.1']
    #allocation7 [shape = 'u8[32768]{0}', space=vmem, size = 0x8000, scoped, tag = 'input window, operand 2, single buffered']
    #allocation8 [shape = 's32[1]{0}', space=sflag, size = 0x4, scoped, tag = 'scoped memory for tpu_custom_call.1']
    #allocation9 [shape = 'u8[32768]{0}', space=vmem, size = 0x8000, scoped, tag = 'input window, operand 4, single buffered']
    #allocation10 [shape = 'u8[32768]{0}', space=vmem, size = 0x8000, scoped, tag = 'input window, operand 6, single buffered']
    #allocation11 [shape = 's32[1]{0}', space=sflag, size = 0x4, scoped, tag = 'scoped memory for tpu_custom_call.1']
    #allocation12 [shape = 'u8[65536]{0}', space=vmem, size = 0x10000, scoped, tag = 'output window, operand 0, single buffered']
    %13 = vsyncpa [#allocation5], 0
    %14 = vsyncpa [#allocation8], 0
    %15 = vsyncpa [#allocation11], 0
    %16 = vsyncpa [#allocation6], 0
    // Predicated region
    $region2: #{tpu_custom_call.1} parent=1 // pred_check
      _
    $region3: #{tpu_custom_call.1} parent=1 // pred_check_branch
      %18 = sbr.rel (0) target = $region5
    $region4: #{tpu_custom_call.1} parent=1 // pred_region
      %s20 = ssub.s32 1024, 1024
      %21 = vsyncadd [#allocation5], %s20
      %s22 = sshll.u32 [#allocation4], 4
      %s23 = int_to_ptr.vmem [resolvable:$true] %s22
      %28 = dma.hbm_to_vmem [thread:$0]  %s1, 1024, %s23, [#allocation5], 64, 64, 4
    $region5: #{tpu_custom_call.1} parent=1 // pred_fallthru
      _
    // Predicated region
    $region6: #{tpu_custom_call.1} parent=1 // pred_check
      _
    $region7: #{tpu_custom_call.1} parent=1 // pred_check_branch
      %30 = sbr.rel (0) target = $region9
    $region8: #{tpu_custom_call.1} parent=1 // pred_region
      %s32 = ssub.s32 1024, 1024
      %33 = vsyncadd [#allocation8], %s32
      %s34 = sshll.u32 [#allocation7], 4
      %s35 = int_to_ptr.vmem [resolvable:$true] %s34
      %40 = dma.hbm_to_vmem [thread:$0]  %s2, 1024, %s35, [#allocation8], 64, 64, 4
    $region9: #{tpu_custom_call.1} parent=1 // pred_fallthru
      _
    // Predicated region
    $region10: #{tpu_custom_call.1} parent=1 // pred_check
      _
    $region11: #{tpu_custom_call.1} parent=1 // pred_check_branch
      %42 = sbr.rel (0) target = $region13
    $region12: #{tpu_custom_call.1} parent=1 // pred_region
      _
    $region13: #{tpu_custom_call.1} parent=1 // pred_fallthru
      _
    // Predicated region
    $region14: #{tpu_custom_call.1} parent=1 // pred_check
      _
    $region15: #{tpu_custom_call.1} parent=1 // pred_check_branch
      %44 = sbr.rel (0) target = $region17
    $region16: #{tpu_custom_call.1} parent=1 // pred_region
      %s46 = ssub.s32 1024, 1024
      %47 = vsyncadd [#allocation8], %s46
      %s48 = sshll.u32 [#allocation9], 4
      %s49 = int_to_ptr.vmem [resolvable:$true] %s48
      %54 = dma.hbm_to_vmem [thread:$0]  %s4, 1024, %s49, [#allocation8], 64, 64, 4
    $region17: #{tpu_custom_call.1} parent=1 // pred_fallthru
      _
    // Predicated region
    $region18: #{tpu_custom_call.1} parent=1 // pred_check
      _
    $region19: #{tpu_custom_call.1} parent=1 // pred_check_branch
      %56 = sbr.rel (0) target = $region21
    $region20: #{tpu_custom_call.1} parent=1 // pred_region
      _
    $region21: #{tpu_custom_call.1} parent=1 // pred_fallthru
      _
    // Predicated region
    $region22: #{tpu_custom_call.1} parent=1 // pred_check
      _
    $region23: #{tpu_custom_call.1} parent=1 // pred_check_branch
      %58 = sbr.rel (0) target = $region25
    $region24: #{tpu_custom_call.1} parent=1 // pred_region
      %s60 = ssub.s32 1024, 1024
      %61 = vsyncadd [#allocation11], %s60
      %s62 = sshll.u32 [#allocation10], 4
      %s63 = int_to_ptr.vmem [resolvable:$true] %s62
      %68 = dma.hbm_to_vmem [thread:$0]  %s6, 1024, %s63, [#allocation11], 64, 64, 4
    $region25: #{tpu_custom_call.1} parent=1 // pred_fallthru
      _
    // Predicated region
    $region26: #{tpu_custom_call.1} parent=1 // pred_check
      _
    $region27: #{tpu_custom_call.1} parent=1 // pred_check_branch
      %70 = sbr.rel (0) target = $region29
    $region28: #{tpu_custom_call.1} parent=1 // pred_region
      _
    $region29: #{tpu_custom_call.1} parent=1 // pred_fallthru
      _
    // Predicated region
    $region30: #{tpu_custom_call.1} parent=1 // pred_check
      _
    $region31: #{tpu_custom_call.1} parent=1 // pred_check_branch
      %72 = sbr.rel (0) target = $region33
    $region32: #{tpu_custom_call.1} parent=1 // pred_region
      %73 = dma.done [#allocation5], 1024
    $region33: #{tpu_custom_call.1} parent=1 // pred_fallthru
      _
    // Predicated region
    $region34: #{tpu_custom_call.1} parent=1 // pred_check
      _
    $region35: #{tpu_custom_call.1} parent=1 // pred_check_branch
      %75 = sbr.rel (0) target = $region37
    $region36: #{tpu_custom_call.1} parent=1 // pred_region
      %76 = dma.done [#allocation8], 1024
    $region37: #{tpu_custom_call.1} parent=1 // pred_fallthru
      _
    // Predicated region
    $region38: #{tpu_custom_call.1} parent=1 // pred_check
      _
    $region39: #{tpu_custom_call.1} parent=1 // pred_check_branch
      %78 = sbr.rel (0) target = $region41
    $region40: #{tpu_custom_call.1} parent=1 // pred_region
      %79 = dma.done [#allocation8], 1024
    $region41: #{tpu_custom_call.1} parent=1 // pred_fallthru
      _
    // Predicated region
    $region42: #{tpu_custom_call.1} parent=1 // pred_check
      _
    $region43: #{tpu_custom_call.1} parent=1 // pred_check_branch
      %81 = sbr.rel (0) target = $region45
    $region44: #{tpu_custom_call.1} parent=1 // pred_region
      %82 = dma.done [#allocation11], 1024
    $region45: #{tpu_custom_call.1} parent=1 // pred_fallthru
      _
    // Predicated region
    $region46: #{tpu_custom_call.1} parent=1 // pred_check
      _
    $region47: #{tpu_custom_call.1} parent=1 // pred_check_branch
      %85 = sbr.rel target = $region49
    $region48: #{tpu_custom_call.1} parent=1 // pred_region
      %86 = sst [smem:[#allocation15]] [#allocation14]
      %87 = sst [smem:[#allocation16]] [#allocation13]
    $region49: #{tpu_custom_call.1} parent=1 // pred_fallthru
      _
    %89 = shalt.err (0)
    %s91 = sshll.u32 [#allocation2], 4
    %s92 = int_to_ptr.vmem [resolvable:$true] %s91
    %94 = dma.hbm_to_vmem [thread:$0]  %s0, 1024, %s92, [#allocation3]
    %v95 = vld [vmem:[#allocation4] sm:$0xf]
    %v96 = vld [vmem:[#allocation4 + $0x4] sm:$0xf]
    %v97 = vld [vmem:[#allocation4 + $0x8] sm:$0xf]
    %v98 = vld [vmem:[#allocation4 + $0xc] sm:$0xf]
    %v99 = vld [vmem:[#allocation4 + $0x10] sm:$0xf]
    %v100 = vld [vmem:[#allocation4 + $0x14] sm:$0xf]
    %v101 = vld [vmem:[#allocation4 + $0x18] sm:$0xf]
    %v102 = vld [vmem:[#allocation4 + $0x1c] sm:$0xf]
    %v103 = vld [vmem:[#allocation4 + $0x20] sm:$0xf]
    %v104 = vld [vmem:[#allocation4 + $0x24] sm:$0xf]
    %v105 = vld [vmem:[#allocation4 + $0x28] sm:$0xf]
    %v106 = vld [vmem:[#allocation4 + $0x2c] sm:$0xf]
    %v107 = vld [vmem:[#allocation4 + $0x30] sm:$0xf]
    %v108 = vld [vmem:[#allocation4 + $0x34] sm:$0xf]
    %v109 = vld [vmem:[#allocation4 + $0x38] sm:$0xf]
    %v110 = vld [vmem:[#allocation4 + $0x3c] sm:$0xf]
    %v111 = vld [vmem:[#allocation7] sm:$0xf]
    %v112 = vld [vmem:[#allocation7 + $0x4] sm:$0xf]
    %v113 = vld [vmem:[#allocation7 + $0x8] sm:$0xf]
    %v114 = vld [vmem:[#allocation7 + $0xc] sm:$0xf]
    %v115 = vld [vmem:[#allocation7 + $0x10] sm:$0xf]
    %v116 = vld [vmem:[#allocation7 + $0x14] sm:$0xf]
    %v117 = vld [vmem:[#allocation7 + $0x18] sm:$0xf]
    %v118 = vld [vmem:[#allocation7 + $0x1c] sm:$0xf]
    %v119 = vld [vmem:[#allocation7 + $0x20] sm:$0xf]
    %v120 = vld [vmem:[#allocation7 + $0x24] sm:$0xf]
    %v121 = vld [vmem:[#allocation7 + $0x28] sm:$0xf]
    %v122 = vld [vmem:[#allocation7 + $0x2c] sm:$0xf]
    %v123 = vld [vmem:[#allocation7 + $0x30] sm:$0xf]
    %v124 = vld [vmem:[#allocation7 + $0x34] sm:$0xf]
    %v125 = vld [vmem:[#allocation7 + $0x38] sm:$0xf]
    %v126 = vld [vmem:[#allocation7 + $0x3c] sm:$0xf]
    %v143 = vunpack.c.l.b16 %v95
    %v144 = vunpack.c.l.b16 %v96
    %v145 = vunpack.c.l.b16 %v97
    %v146 = vunpack.c.l.b16 %v98
    %v147 = vunpack.c.l.b16 %v99
    %v148 = vunpack.c.l.b16 %v100
    %v149 = vunpack.c.l.b16 %v101
    %v150 = vunpack.c.l.b16 %v102
    %v151 = vunpack.c.l.b16 %v103
    %v152 = vunpack.c.l.b16 %v104
    %v153 = vunpack.c.l.b16 %v105
    %v154 = vunpack.c.l.b16 %v106
    %v155 = vunpack.c.l.b16 %v107
    %v156 = vunpack.c.l.b16 %v108
    %v157 = vunpack.c.l.b16 %v109
    %v158 = vunpack.c.l.b16 %v110
    %v159 = vpack.c.b16 %v144, %v143
    %v160 = vpack.c.b16 %v146, %v145
    %v161 = vpack.c.b16 %v148, %v147
    %v162 = vpack.c.b16 %v150, %v149
    %v163 = vpack.c.b16 %v152, %v151
    %v164 = vpack.c.b16 %v154, %v153
    %v165 = vpack.c.b16 %v156, %v155
    %v166 = vpack.c.b16 %v158, %v157
    %v191 = vunpack.c.l.b16 %v111
    %v192 = vunpack.c.l.b16 %v112
    %v193 = vunpack.c.l.b16 %v113
    %v194 = vunpack.c.l.b16 %v114
    %v195 = vunpack.c.l.b16 %v115
    %v196 = vunpack.c.l.b16 %v116
    %v197 = vunpack.c.l.b16 %v117
    %v198 = vunpack.c.l.b16 %v118
    %v199 = vunpack.c.l.b16 %v119
    %v200 = vunpack.c.l.b16 %v120
    %v201 = vunpack.c.l.b16 %v121
    %v202 = vunpack.c.l.b16 %v122
    %v203 = vunpack.c.l.b16 %v123
    %v204 = vunpack.c.l.b16 %v124
    %v205 = vunpack.c.l.b16 %v125
    %v206 = vunpack.c.l.b16 %v126
    %v207 = vpack.c.b16 %v192, %v191
    %v208 = vpack.c.b16 %v194, %v193
    %v209 = vpack.c.b16 %v196, %v195
    %v210 = vpack.c.b16 %v198, %v197
    %v211 = vpack.c.b16 %v200, %v199
    %v212 = vpack.c.b16 %v202, %v201
    %v213 = vpack.c.b16 %v204, %v203
    %v214 = vpack.c.b16 %v206, %v205
    %223 = vmatprep.subr.bf16.mxu0 0
    %224 = vmatpush1.bf16.msra.mxu0 %v207
    %225 = vmatprep.subr.bf16.mxu0 0
    %226 = vmatpush1.bf16.msra.mxu0 %v208
    %227 = vmatprep.subr.bf16.mxu0 0
    %228 = vmatpush1.bf16.msra.mxu0 %v209
    %229 = vmatprep.subr.bf16.mxu0 0
    %230 = vmatpush1.bf16.msra.mxu0 %v210
    %231 = vmatprep.subr.bf16.mxu0 0
    %232 = vmatpush1.bf16.msra.mxu0 %v211
    %233 = vmatprep.subr.bf16.mxu0 0
    %234 = vmatpush1.bf16.msra.mxu0 %v212
    %235 = vmatprep.subr.bf16.mxu0 0
    %236 = vmatpush1.bf16.msra.mxu0 %v213
    %237 = vmatprep.subr.bf16.mxu0 0
    %238 = vmatpush1.bf16.msra.mxu0 %v214
    %239 = vmatprep.subr.bf16.mxu0 0
    %240 = vmatpush1.bf16.msra.mxu0 0
    %241 = vmatprep.subr.bf16.mxu0 0
    %242 = vmatpush1.bf16.msra.mxu0 0
    %243 = vmatprep.subr.bf16.mxu0 0
    %244 = vmatpush1.bf16.msra.mxu0 0
    %245 = vmatprep.subr.bf16.mxu0 0
    %246 = vmatpush1.bf16.msra.mxu0 0
    %247 = vmatprep.subr.bf16.mxu0 0
    %248 = vmatpush1.bf16.msra.mxu0 0
    %249 = vmatprep.subr.bf16.mxu0 0
    %250 = vmatpush1.bf16.msra.mxu0 0
    %251 = vmatprep.subr.bf16.mxu0 0
    %252 = vmatpush1.bf16.msra.mxu0 0
    %253 = vmatprep.subr.bf16.mxu0 0
    %254 = vmatpush1.bf16.msra.mxu0 0
    %255 = vmatprep.mubr.bf16.mxu0 0
    %256 = vmatmul.mubr.bf16.gmra.mrb[0].mxu0 %v159
    %v257 = vpop.f32.mrb[0].mxu0
    %v258 = vadd.f32 0.0, %v257
    %v259 = vpop.f32.mrb[0].mxu0
    %v260 = vpop.f32.mrb[0].mxu0
    %v261 = vadd.f32 0.0, %v260
    %v262 = vpop.f32.mrb[0].mxu0
    %263 = vmatprep.mubr.bf16.mxu0 0
    %264 = vmatmul.mubr.bf16.gmra.mrb[0].mxu0 %v160
    %v265 = vpop.f32.mrb[0].mxu0
    %v266 = vadd.f32 0.0, %v265
    %v267 = vpop.f32.mrb[0].mxu0
    %v268 = vpop.f32.mrb[0].mxu0
    %v269 = vadd.f32 0.0, %v268
    %v270 = vpop.f32.mrb[0].mxu0
    %271 = vmatprep.mubr.bf16.mxu0 0
    %272 = vmatmul.mubr.bf16.gmra.mrb[0].mxu0 %v161
    %v273 = vpop.f32.mrb[0].mxu0
    %v274 = vadd.f32 0.0, %v273
    %v275 = vpop.f32.mrb[0].mxu0
    %v276 = vpop.f32.mrb[0].mxu0
    %v277 = vadd.f32 0.0, %v276
    %v278 = vpop.f32.mrb[0].mxu0
    %279 = vmatprep.mubr.bf16.mxu0 0
    %280 = vmatmul.mubr.bf16.gmra.mrb[0].mxu0 %v162
    %v281 = vpop.f32.mrb[0].mxu0
    %v282 = vadd.f32 0.0, %v281
    %v283 = vpop.f32.mrb[0].mxu0
    %v284 = vpop.f32.mrb[0].mxu0
    %v285 = vadd.f32 0.0, %v284
    %v286 = vpop.f32.mrb[0].mxu0
    %287 = vmatprep.mubr.bf16.mxu0 0
    %288 = vmatmul.mubr.bf16.gmra.mrb[0].mxu0 %v163
    %v289 = vpop.f32.mrb[0].mxu0
    %v290 = vadd.f32 0.0, %v289
    %v291 = vpop.f32.mrb[0].mxu0
    %v292 = vpop.f32.mrb[0].mxu0
    %v293 = vadd.f32 0.0, %v292
    %v294 = vpop.f32.mrb[0].mxu0
    %295 = vmatprep.mubr.bf16.mxu0 0
    %296 = vmatmul.mubr.bf16.gmra.mrb[0].mxu0 %v164
    %v297 = vpop.f32.mrb[0].mxu0
    %v298 = vadd.f32 0.0, %v297
    %v299 = vpop.f32.mrb[0].mxu0
    %v300 = vpop.f32.mrb[0].mxu0
    %v301 = vadd.f32 0.0, %v300
    %v302 = vpop.f32.mrb[0].mxu0
    %303 = vmatprep.mubr.bf16.mxu0 0
    %304 = vmatmul.mubr.bf16.gmra.mrb[0].mxu0 %v165
    %v305 = vpop.f32.mrb[0].mxu0
    %v306 = vadd.f32 0.0, %v305
    %v307 = vpop.f32.mrb[0].mxu0
    %v308 = vpop.f32.mrb[0].mxu0
    %v309 = vadd.f32 0.0, %v308
    %v310 = vpop.f32.mrb[0].mxu0
    %311 = vmatprep.mubr.bf16.mxu0 0
    %312 = vmatmul.mubr.bf16.gmra.mrb[0].mxu0 %v166
    %v313 = vpop.f32.mrb[0].mxu0
    %v314 = vadd.f32 0.0, %v313
    %v315 = vpop.f32.mrb[0].mxu0
    %v316 = vpop.f32.mrb[0].mxu0
    %v317 = vadd.f32 0.0, %v316
    %v318 = vpop.f32.mrb[0].mxu0
    %319 = vdwg.mxu0
    %v320 = vpack.c.bf16 %v261, %v258
    %v321 = vpack.c.bf16 %v269, %v266
    %v322 = vpack.c.bf16 %v277, %v274
    %v323 = vpack.c.bf16 %v285, %v282
    %v324 = vpack.c.bf16 %v293, %v290
    %v325 = vpack.c.bf16 %v301, %v298
    %v326 = vpack.c.bf16 %v309, %v306
    %v327 = vpack.c.bf16 %v317, %v314
    %s328 = smul.u32 4, 16
    %s329 = smul.u32 %s328, 1
    %s330 = sshll.u32 %s329, 4
    %331 = dma.done [#allocation3], %s330
    %v332 = vld [vmem:[#allocation2] sm:$0xff]
    %v333 = vld [vmem:[#allocation2 + $0x8] sm:$0xff]
    %v334 = vld [vmem:[#allocation2 + $0x10] sm:$0xff]
    %v335 = vld [vmem:[#allocation2 + $0x18] sm:$0xff]
    %v336 = vld [vmem:[#allocation2 + $0x20] sm:$0xff]
    %v337 = vld [vmem:[#allocation2 + $0x28] sm:$0xff]
    %v338 = vld [vmem:[#allocation2 + $0x30] sm:$0xff]
    %v339 = vld [vmem:[#allocation2 + $0x38] sm:$0xff]
    %v340 = vld [vmem:[%s3] sm:$0x1]
    %v342 = vlaneseq
    %v343 = vshrl.u32 %v342, 7
    %v344 = vsub.s32 0, %v343
    %v345 = vrot.slane %v340, %v344
    %347 = vmatprep.subr.bf16.mxu0 0
    %348 = vmatpush1.bf16.msra.mxu0 %v320
    %349 = vmatprep.subr.bf16.mxu0 0
    %350 = vmatpush1.bf16.msra.mxu0 %v321
    %351 = vmatprep.subr.bf16.mxu0 0
    %352 = vmatpush1.bf16.msra.mxu0 %v322
    %353 = vmatprep.subr.bf16.mxu0 0
    %354 = vmatpush1.bf16.msra.mxu0 %v323
    %355 = vmatprep.subr.bf16.mxu0 0
    %356 = vmatpush1.bf16.msra.mxu0 %v324
    %357 = vmatprep.subr.bf16.mxu0 0
    %358 = vmatpush1.bf16.msra.mxu0 %v325
    %359 = vmatprep.subr.bf16.mxu0 0
    %360 = vmatpush1.bf16.msra.mxu0 %v326
    %361 = vmatprep.subr.bf16.mxu0 0
    %362 = vmatpush1.bf16.msra.mxu0 %v327
    %363 = vmatprep.subr.bf16.mxu0 0
    %364 = vmatpush1.bf16.msra.mxu0 0
    %365 = vmatprep.subr.bf16.mxu0 0
    %366 = vmatpush1.bf16.msra.mxu0 0
    %367 = vmatprep.subr.bf16.mxu0 0
    %368 = vmatpush1.bf16.msra.mxu0 0
    %369 = vmatprep.subr.bf16.mxu0 0
    %370 = vmatpush1.bf16.msra.mxu0 0
    %371 = vmatprep.subr.bf16.mxu0 0
    %372 = vmatpush1.bf16.msra.mxu0 0
    %373 = vmatprep.subr.bf16.mxu0 0
    %374 = vmatpush1.bf16.msra.mxu0 0
    %375 = vmatprep.subr.bf16.mxu0 0
    %376 = vmatpush1.bf16.msra.mxu0 0
    %377 = vmatprep.subr.bf16.mxu0 0
    %378 = vmatpush1.bf16.msra.mxu0 0
    %379 = vmatprep.mubr.bf16.mxu0 0
    %380 = vmatmul.mubr.bf16.gmra.mrb[0].mxu0 %v332
    %v381 = vpop.f32.mrb[0].mxu0
    %v382 = vadd.f32 %v345, %v381
    %v383 = vpop.f32.mrb[0].mxu0
    %v384 = vpop.f32.mrb[0].mxu0
    %v385 = vadd.f32 %v345, %v384
    %v386 = vpop.f32.mrb[0].mxu0
    %387 = vmatprep.mubr.bf16.mxu0 0
    %388 = vmatmul.mubr.bf16.gmra.mrb[0].mxu0 %v333
    %v389 = vpop.f32.mrb[0].mxu0
    %v390 = vadd.f32 %v345, %v389
    %v391 = vpop.f32.mrb[0].mxu0
    %v392 = vpop.f32.mrb[0].mxu0
    %v393 = vadd.f32 %v345, %v392
    %v394 = vpop.f32.mrb[0].mxu0
    %395 = vmatprep.mubr.bf16.mxu0 0
    %396 = vmatmul.mubr.bf16.gmra.mrb[0].mxu0 %v334
    %v397 = vpop.f32.mrb[0].mxu0
    %v398 = vadd.f32 %v345, %v397
    %v399 = vpop.f32.mrb[0].mxu0
    %v400 = vpop.f32.mrb[0].mxu0
    %v401 = vadd.f32 %v345, %v400
    %v402 = vpop.f32.mrb[0].mxu0
    %403 = vmatprep.mubr.bf16.mxu0 0
    %404 = vmatmul.mubr.bf16.gmra.mrb[0].mxu0 %v335
    %v405 = vpop.f32.mrb[0].mxu0
    %v406 = vadd.f32 %v345, %v405
    %v407 = vpop.f32.mrb[0].mxu0
    %v408 = vpop.f32.mrb[0].mxu0
    %v409 = vadd.f32 %v345, %v408
    %v410 = vpop.f32.mrb[0].mxu0
    %411 = vmatprep.mubr.bf16.mxu0 0
    %412 = vmatmul.mubr.bf16.gmra.mrb[0].mxu0 %v336
    %v413 = vpop.f32.mrb[0].mxu0
    %v414 = vadd.f32 %v345, %v413
    %v415 = vpop.f32.mrb[0].mxu0
    %v416 = vpop.f32.mrb[0].mxu0
    %v417 = vadd.f32 %v345, %v416
    %v418 = vpop.f32.mrb[0].mxu0
    %419 = vmatprep.mubr.bf16.mxu0 0
    %420 = vmatmul.mubr.bf16.gmra.mrb[0].mxu0 %v337
    %v421 = vpop.f32.mrb[0].mxu0
    %v422 = vadd.f32 %v345, %v421
    %v423 = vpop.f32.mrb[0].mxu0
    %v424 = vpop.f32.mrb[0].mxu0
    %v425 = vadd.f32 %v345, %v424
    %v426 = vpop.f32.mrb[0].mxu0
    %427 = vmatprep.mubr.bf16.mxu0 0
    %428 = vmatmul.mubr.bf16.gmra.mrb[0].mxu0 %v338
    %v429 = vpop.f32.mrb[0].mxu0
    %v430 = vadd.f32 %v345, %v429
    %v431 = vpop.f32.mrb[0].mxu0
    %v432 = vpop.f32.mrb[0].mxu0
    %v433 = vadd.f32 %v345, %v432
    %v434 = vpop.f32.mrb[0].mxu0
    %435 = vmatprep.mubr.bf16.mxu0 0
    %436 = vmatmul.mubr.bf16.gmra.mrb[0].mxu0 %v339
    %v437 = vpop.f32.mrb[0].mxu0
    %v438 = vadd.f32 %v345, %v437
    %v439 = vpop.f32.mrb[0].mxu0
    %v440 = vpop.f32.mrb[0].mxu0
    %v441 = vadd.f32 %v345, %v440
    %v442 = vpop.f32.mrb[0].mxu0
    %443 = vdwg.mxu0
    %v444 = vmax.f32 %v382, 0.0
    %v445 = vmax.f32 %v385, 0.0
    %v446 = vmax.f32 %v390, 0.0
    %v447 = vmax.f32 %v393, 0.0
    %v448 = vmax.f32 %v398, 0.0
    %v449 = vmax.f32 %v401, 0.0
    %v450 = vmax.f32 %v406, 0.0
    %v451 = vmax.f32 %v409, 0.0
    %v452 = vmax.f32 %v414, 0.0
    %v453 = vmax.f32 %v417, 0.0
    %v454 = vmax.f32 %v422, 0.0
    %v455 = vmax.f32 %v425, 0.0
    %v456 = vmax.f32 %v430, 0.0
    %v457 = vmax.f32 %v433, 0.0
    %v458 = vmax.f32 %v438, 0.0
    %v459 = vmax.f32 %v441, 0.0
    %v460 = vpack.c.bf16 %v445, %v444
    %v461 = vpack.c.bf16 %v447, %v446
    %v462 = vpack.c.bf16 %v449, %v448
    %v463 = vpack.c.bf16 %v451, %v450
    %v464 = vpack.c.bf16 %v453, %v452
    %v465 = vpack.c.bf16 %v455, %v454
    %v466 = vpack.c.bf16 %v457, %v456
    %v467 = vpack.c.bf16 %v459, %v458
    %v468 = vld [vmem:[#allocation9] sm:$0xf]
    %v469 = vld [vmem:[#allocation9 + $0x4] sm:$0xf]
    %v470 = vld [vmem:[#allocation9 + $0x8] sm:$0xf]
    %v471 = vld [vmem:[#allocation9 + $0xc] sm:$0xf]
    %v472 = vld [vmem:[#allocation9 + $0x10] sm:$0xf]
    %v473 = vld [vmem:[#allocation9 + $0x14] sm:$0xf]
    %v474 = vld [vmem:[#allocation9 + $0x18] sm:$0xf]
    %v475 = vld [vmem:[#allocation9 + $0x1c] sm:$0xf]
    %v476 = vld [vmem:[#allocation9 + $0x20] sm:$0xf]
    %v477 = vld [vmem:[#allocation9 + $0x24] sm:$0xf]
    %v478 = vld [vmem:[#allocation9 + $0x28] sm:$0xf]
    %v479 = vld [vmem:[#allocation9 + $0x2c] sm:$0xf]
    %v480 = vld [vmem:[#allocation9 + $0x30] sm:$0xf]
    %v481 = vld [vmem:[#allocation9 + $0x34] sm:$0xf]
    %v482 = vld [vmem:[#allocation9 + $0x38] sm:$0xf]
    %v483 = vld [vmem:[#allocation9 + $0x3c] sm:$0xf]
    %v500 = vunpack.c.l.b16 %v468
    %v501 = vunpack.c.l.b16 %v469
    %v502 = vunpack.c.l.b16 %v470
    %v503 = vunpack.c.l.b16 %v471
    %v504 = vunpack.c.l.b16 %v472
    %v505 = vunpack.c.l.b16 %v473
    %v506 = vunpack.c.l.b16 %v474
    %v507 = vunpack.c.l.b16 %v475
    %v508 = vunpack.c.l.b16 %v476
    %v509 = vunpack.c.l.b16 %v477
    %v510 = vunpack.c.l.b16 %v478
    %v511 = vunpack.c.l.b16 %v479
    %v512 = vunpack.c.l.b16 %v480
    %v513 = vunpack.c.l.b16 %v481
    %v514 = vunpack.c.l.b16 %v482
    %v515 = vunpack.c.l.b16 %v483
    %v516 = vpack.c.b16 %v501, %v500
    %v517 = vpack.c.b16 %v503, %v502
    %v518 = vpack.c.b16 %v505, %v504
    %v519 = vpack.c.b16 %v507, %v506
    %v520 = vpack.c.b16 %v509, %v508
    %v521 = vpack.c.b16 %v511, %v510
    %v522 = vpack.c.b16 %v513, %v512
    %v523 = vpack.c.b16 %v515, %v514
    %532 = vmatprep.subr.bf16.mxu0 0
    %533 = vmatpush1.bf16.msra.mxu0 %v516
    %534 = vmatprep.subr.bf16.mxu0 0
    %535 = vmatpush1.bf16.msra.mxu0 %v517
    %536 = vmatprep.subr.bf16.mxu0 0
    %537 = vmatpush1.bf16.msra.mxu0 %v518
    %538 = vmatprep.subr.bf16.mxu0 0
    %539 = vmatpush1.bf16.msra.mxu0 %v519
    %540 = vmatprep.subr.bf16.mxu0 0
    %541 = vmatpush1.bf16.msra.mxu0 %v520
    %542 = vmatprep.subr.bf16.mxu0 0
    %543 = vmatpush1.bf16.msra.mxu0 %v521
    %544 = vmatprep.subr.bf16.mxu0 0
    %545 = vmatpush1.bf16.msra.mxu0 %v522
    %546 = vmatprep.subr.bf16.mxu0 0
    %547 = vmatpush1.bf16.msra.mxu0 %v523
    %548 = vmatprep.subr.bf16.mxu0 0
    %549 = vmatpush1.bf16.msra.mxu0 0
    %550 = vmatprep.subr.bf16.mxu0 0
    %551 = vmatpush1.bf16.msra.mxu0 0
    %552 = vmatprep.subr.bf16.mxu0 0
    %553 = vmatpush1.bf16.msra.mxu0 0
    %554 = vmatprep.subr.bf16.mxu0 0
    %555 = vmatpush1.bf16.msra.mxu0 0
    %556 = vmatprep.subr.bf16.mxu0 0
    %557 = vmatpush1.bf16.msra.mxu0 0
    %558 = vmatprep.subr.bf16.mxu0 0
    %559 = vmatpush1.bf16.msra.mxu0 0
    %560 = vmatprep.subr.bf16.mxu0 0
    %561 = vmatpush1.bf16.msra.mxu0 0
    %562 = vmatprep.subr.bf16.mxu0 0
    %563 = vmatpush1.bf16.msra.mxu0 0
    %564 = vmatprep.mubr.bf16.mxu0 0
    %565 = vmatmul.mubr.bf16.gmra.mrb[0].mxu0 %v460
    %v566 = vpop.f32.mrb[0].mxu0
    %v567 = vadd.f32 0.0, %v566
    %v568 = vpop.f32.mrb[0].mxu0
    %v569 = vpop.f32.mrb[0].mxu0
    %v570 = vadd.f32 0.0, %v569
    %v571 = vpop.f32.mrb[0].mxu0
    %572 = vmatprep.mubr.bf16.mxu0 0
    %573 = vmatmul.mubr.bf16.gmra.mrb[0].mxu0 %v461
    %v574 = vpop.f32.mrb[0].mxu0
    %v575 = vadd.f32 0.0, %v574
    %v576 = vpop.f32.mrb[0].mxu0
    %v577 = vpop.f32.mrb[0].mxu0
    %v578 = vadd.f32 0.0, %v577
    %v579 = vpop.f32.mrb[0].mxu0
    %580 = vmatprep.mubr.bf16.mxu0 0
    %581 = vmatmul.mubr.bf16.gmra.mrb[0].mxu0 %v462
    %v582 = vpop.f32.mrb[0].mxu0
    %v583 = vadd.f32 0.0, %v582
    %v584 = vpop.f32.mrb[0].mxu0
    %v585 = vpop.f32.mrb[0].mxu0
    %v586 = vadd.f32 0.0, %v585
    %v587 = vpop.f32.mrb[0].mxu0
    %588 = vmatprep.mubr.bf16.mxu0 0
    %589 = vmatmul.mubr.bf16.gmra.mrb[0].mxu0 %v463
    %v590 = vpop.f32.mrb[0].mxu0
    %v591 = vadd.f32 0.0, %v590
    %v592 = vpop.f32.mrb[0].mxu0
    %v593 = vpop.f32.mrb[0].mxu0
    %v594 = vadd.f32 0.0, %v593
    %v595 = vpop.f32.mrb[0].mxu0
    %596 = vmatprep.mubr.bf16.mxu0 0
    %597 = vmatmul.mubr.bf16.gmra.mrb[0].mxu0 %v464
    %v598 = vpop.f32.mrb[0].mxu0
    %v599 = vadd.f32 0.0, %v598
    %v600 = vpop.f32.mrb[0].mxu0
    %v601 = vpop.f32.mrb[0].mxu0
    %v602 = vadd.f32 0.0, %v601
    %v603 = vpop.f32.mrb[0].mxu0
    %604 = vmatprep.mubr.bf16.mxu0 0
    %605 = vmatmul.mubr.bf16.gmra.mrb[0].mxu0 %v465
    %v606 = vpop.f32.mrb[0].mxu0
    %v607 = vadd.f32 0.0, %v606
    %v608 = vpop.f32.mrb[0].mxu0
    %v609 = vpop.f32.mrb[0].mxu0
    %v610 = vadd.f32 0.0, %v609
    %v611 = vpop.f32.mrb[0].mxu0
    %612 = vmatprep.mubr.bf16.mxu0 0
    %613 = vmatmul.mubr.bf16.gmra.mrb[0].mxu0 %v466
    %v614 = vpop.f32.mrb[0].mxu0
    %v615 = vadd.f32 0.0, %v614
    %v616 = vpop.f32.mrb[0].mxu0
    %v617 = vpop.f32.mrb[0].mxu0
    %v618 = vadd.f32 0.0, %v617
    %v619 = vpop.f32.mrb[0].mxu0
    %620 = vmatprep.mubr.bf16.mxu0 0
    %621 = vmatmul.mubr.bf16.gmra.mrb[0].mxu0 %v467
    %v622 = vpop.f32.mrb[0].mxu0
    %v623 = vadd.f32 0.0, %v622
    %v624 = vpop.f32.mrb[0].mxu0
    %v625 = vpop.f32.mrb[0].mxu0
    %v626 = vadd.f32 0.0, %v625
    %v627 = vpop.f32.mrb[0].mxu0
    %628 = vdwg.mxu0
    %v629 = vpack.c.bf16 %v570, %v567
    %v630 = vpack.c.bf16 %v578, %v575
    %v631 = vpack.c.bf16 %v586, %v583
    %v632 = vpack.c.bf16 %v594, %v591
    %v633 = vpack.c.bf16 %v602, %v599
    %v634 = vpack.c.bf16 %v610, %v607
    %v635 = vpack.c.bf16 %v618, %v615
    %v636 = vpack.c.bf16 %v626, %v623
    %v637 = vld [vmem:[%s5] sm:$0x1]
    %v639 = vlaneseq
    %v640 = vshrl.u32 %v639, 7
    %v641 = vsub.s32 0, %v640
    %v642 = vrot.slane %v637, %v641
    %644 = vmatprep.subr.bf16.mxu0 0
    %645 = vmatpush1.bf16.msra.mxu0 %v629
    %646 = vmatprep.subr.bf16.mxu0 0
    %647 = vmatpush1.bf16.msra.mxu0 %v630
    %648 = vmatprep.subr.bf16.mxu0 0
    %649 = vmatpush1.bf16.msra.mxu0 %v631
    %650 = vmatprep.subr.bf16.mxu0 0
    %651 = vmatpush1.bf16.msra.mxu0 %v632
    %652 = vmatprep.subr.bf16.mxu0 0
    %653 = vmatpush1.bf16.msra.mxu0 %v633
    %654 = vmatprep.subr.bf16.mxu0 0
    %655 = vmatpush1.bf16.msra.mxu0 %v634
    %656 = vmatprep.subr.bf16.mxu0 0
    %657 = vmatpush1.bf16.msra.mxu0 %v635
    %658 = vmatprep.subr.bf16.mxu0 0
    %659 = vmatpush1.bf16.msra.mxu0 %v636
    %660 = vmatprep.subr.bf16.mxu0 0
    %661 = vmatpush1.bf16.msra.mxu0 0
    %662 = vmatprep.subr.bf16.mxu0 0
    %663 = vmatpush1.bf16.msra.mxu0 0
    %664 = vmatprep.subr.bf16.mxu0 0
    %665 = vmatpush1.bf16.msra.mxu0 0
    %666 = vmatprep.subr.bf16.mxu0 0
    %667 = vmatpush1.bf16.msra.mxu0 0
    %668 = vmatprep.subr.bf16.mxu0 0
    %669 = vmatpush1.bf16.msra.mxu0 0
    %670 = vmatprep.subr.bf16.mxu0 0
    %671 = vmatpush1.bf16.msra.mxu0 0
    %672 = vmatprep.subr.bf16.mxu0 0
    %673 = vmatpush1.bf16.msra.mxu0 0
    %674 = vmatprep.subr.bf16.mxu0 0
    %675 = vmatpush1.bf16.msra.mxu0 0
    %676 = vmatprep.mubr.bf16.mxu0 0
    %677 = vmatmul.mubr.bf16.gmra.mrb[0].mxu0 %v332
    %v678 = vpop.f32.mrb[0].mxu0
    %v679 = vadd.f32 %v642, %v678
    %v680 = vpop.f32.mrb[0].mxu0
    %v681 = vpop.f32.mrb[0].mxu0
    %v682 = vadd.f32 %v642, %v681
    %v683 = vpop.f32.mrb[0].mxu0
    %684 = vmatprep.mubr.bf16.mxu0 0
    %685 = vmatmul.mubr.bf16.gmra.mrb[0].mxu0 %v333
    %v686 = vpop.f32.mrb[0].mxu0
    %v687 = vadd.f32 %v642, %v686
    %v688 = vpop.f32.mrb[0].mxu0
    %v689 = vpop.f32.mrb[0].mxu0
    %v690 = vadd.f32 %v642, %v689
    %v691 = vpop.f32.mrb[0].mxu0
    %692 = vmatprep.mubr.bf16.mxu0 0
    %693 = vmatmul.mubr.bf16.gmra.mrb[0].mxu0 %v334
    %v694 = vpop.f32.mrb[0].mxu0
    %v695 = vadd.f32 %v642, %v694
    %v696 = vpop.f32.mrb[0].mxu0
    %v697 = vpop.f32.mrb[0].mxu0
    %v698 = vadd.f32 %v642, %v697
    %v699 = vpop.f32.mrb[0].mxu0
    %700 = vmatprep.mubr.bf16.mxu0 0
    %701 = vmatmul.mubr.bf16.gmra.mrb[0].mxu0 %v335
    %v702 = vpop.f32.mrb[0].mxu0
    %v703 = vadd.f32 %v642, %v702
    %v704 = vpop.f32.mrb[0].mxu0
    %v705 = vpop.f32.mrb[0].mxu0
    %v706 = vadd.f32 %v642, %v705
    %v707 = vpop.f32.mrb[0].mxu0
    %708 = vmatprep.mubr.bf16.mxu0 0
    %709 = vmatmul.mubr.bf16.gmra.mrb[0].mxu0 %v336
    %v710 = vpop.f32.mrb[0].mxu0
    %v711 = vadd.f32 %v642, %v710
    %v712 = vpop.f32.mrb[0].mxu0
    %v713 = vpop.f32.mrb[0].mxu0
    %v714 = vadd.f32 %v642, %v713
    %v715 = vpop.f32.mrb[0].mxu0
    %716 = vmatprep.mubr.bf16.mxu0 0
    %717 = vmatmul.mubr.bf16.gmra.mrb[0].mxu0 %v337
    %v718 = vpop.f32.mrb[0].mxu0
    %v719 = vadd.f32 %v642, %v718
    %v720 = vpop.f32.mrb[0].mxu0
    %v721 = vpop.f32.mrb[0].mxu0
    %v722 = vadd.f32 %v642, %v721
    %v723 = vpop.f32.mrb[0].mxu0
    %724 = vmatprep.mubr.bf16.mxu0 0
    %725 = vmatmul.mubr.bf16.gmra.mrb[0].mxu0 %v338
    %v726 = vpop.f32.mrb[0].mxu0
    %v727 = vadd.f32 %v642, %v726
    %v728 = vpop.f32.mrb[0].mxu0
    %v729 = vpop.f32.mrb[0].mxu0
    %v730 = vadd.f32 %v642, %v729
    %v731 = vpop.f32.mrb[0].mxu0
    %732 = vmatprep.mubr.bf16.mxu0 0
    %733 = vmatmul.mubr.bf16.gmra.mrb[0].mxu0 %v339
    %v734 = vpop.f32.mrb[0].mxu0
    %v735 = vadd.f32 %v642, %v734
    %v736 = vpop.f32.mrb[0].mxu0
    %v737 = vpop.f32.mrb[0].mxu0
    %v738 = vadd.f32 %v642, %v737
    %v739 = vpop.f32.mrb[0].mxu0
    %740 = vdwg.mxu0
    %v741 = vmax.f32 %v679, 0.0
    %v742 = vmax.f32 %v682, 0.0
    %v743 = vmax.f32 %v687, 0.0
    %v744 = vmax.f32 %v690, 0.0
    %v745 = vmax.f32 %v695, 0.0
    %v746 = vmax.f32 %v698, 0.0
    %v747 = vmax.f32 %v703, 0.0
    %v748 = vmax.f32 %v706, 0.0
    %v749 = vmax.f32 %v711, 0.0
    %v750 = vmax.f32 %v714, 0.0
    %v751 = vmax.f32 %v719, 0.0
    %v752 = vmax.f32 %v722, 0.0
    %v753 = vmax.f32 %v727, 0.0
    %v754 = vmax.f32 %v730, 0.0
    %v755 = vmax.f32 %v735, 0.0
    %v756 = vmax.f32 %v738, 0.0
    %v757 = vpack.c.bf16 %v742, %v741
    %v758 = vpack.c.bf16 %v744, %v743
    %v759 = vpack.c.bf16 %v746, %v745
    %v760 = vpack.c.bf16 %v748, %v747
    %v761 = vpack.c.bf16 %v750, %v749
    %v762 = vpack.c.bf16 %v752, %v751
    %v763 = vpack.c.bf16 %v754, %v753
    %v764 = vpack.c.bf16 %v756, %v755
    %v765 = vld [vmem:[#allocation10] sm:$0xf]
    %v766 = vld [vmem:[#allocation10 + $0x4] sm:$0xf]
    %v767 = vld [vmem:[#allocation10 + $0x8] sm:$0xf]
    %v768 = vld [vmem:[#allocation10 + $0xc] sm:$0xf]
    %v769 = vld [vmem:[#allocation10 + $0x10] sm:$0xf]
    %v770 = vld [vmem:[#allocation10 + $0x14] sm:$0xf]
    %v771 = vld [vmem:[#allocation10 + $0x18] sm:$0xf]
    %v772 = vld [vmem:[#allocation10 + $0x1c] sm:$0xf]
    %v773 = vld [vmem:[#allocation10 + $0x20] sm:$0xf]
    %v774 = vld [vmem:[#allocation10 + $0x24] sm:$0xf]
    %v775 = vld [vmem:[#allocation10 + $0x28] sm:$0xf]
    %v776 = vld [vmem:[#allocation10 + $0x2c] sm:$0xf]
    %v777 = vld [vmem:[#allocation10 + $0x30] sm:$0xf]
    %v778 = vld [vmem:[#allocation10 + $0x34] sm:$0xf]
    %v779 = vld [vmem:[#allocation10 + $0x38] sm:$0xf]
    %v780 = vld [vmem:[#allocation10 + $0x3c] sm:$0xf]
    %v797 = vunpack.c.l.b16 %v765
    %v798 = vunpack.c.l.b16 %v766
    %v799 = vunpack.c.l.b16 %v767
    %v800 = vunpack.c.l.b16 %v768
    %v801 = vunpack.c.l.b16 %v769
    %v802 = vunpack.c.l.b16 %v770
    %v803 = vunpack.c.l.b16 %v771
    %v804 = vunpack.c.l.b16 %v772
    %v805 = vunpack.c.l.b16 %v773
    %v806 = vunpack.c.l.b16 %v774
    %v807 = vunpack.c.l.b16 %v775
    %v808 = vunpack.c.l.b16 %v776
    %v809 = vunpack.c.l.b16 %v777
    %v810 = vunpack.c.l.b16 %v778
    %v811 = vunpack.c.l.b16 %v779
    %v812 = vunpack.c.l.b16 %v780
    %v813 = vpack.c.b16 %v798, %v797
    %v814 = vpack.c.b16 %v800, %v799
    %v815 = vpack.c.b16 %v802, %v801
    %v816 = vpack.c.b16 %v804, %v803
    %v817 = vpack.c.b16 %v806, %v805
    %v818 = vpack.c.b16 %v808, %v807
    %v819 = vpack.c.b16 %v810, %v809
    %v820 = vpack.c.b16 %v812, %v811
    %829 = vmatprep.subr.bf16.mxu0 0
    %830 = vmatpush1.bf16.msra.mxu0 %v813
    %831 = vmatprep.subr.bf16.mxu0 0
    %832 = vmatpush1.bf16.msra.mxu0 %v814
    %833 = vmatprep.subr.bf16.mxu0 0
    %834 = vmatpush1.bf16.msra.mxu0 %v815
    %835 = vmatprep.subr.bf16.mxu0 0
    %836 = vmatpush1.bf16.msra.mxu0 %v816
    %837 = vmatprep.subr.bf16.mxu0 0
    %838 = vmatpush1.bf16.msra.mxu0 %v817
    %839 = vmatprep.subr.bf16.mxu0 0
    %840 = vmatpush1.bf16.msra.mxu0 %v818
    %841 = vmatprep.subr.bf16.mxu0 0
    %842 = vmatpush1.bf16.msra.mxu0 %v819
    %843 = vmatprep.subr.bf16.mxu0 0
    %844 = vmatpush1.bf16.msra.mxu0 %v820
    %845 = vmatprep.subr.bf16.mxu0 0
    %846 = vmatpush1.bf16.msra.mxu0 0
    %847 = vmatprep.subr.bf16.mxu0 0
    %848 = vmatpush1.bf16.msra.mxu0 0
    %849 = vmatprep.subr.bf16.mxu0 0
    %850 = vmatpush1.bf16.msra.mxu0 0
    %851 = vmatprep.subr.bf16.mxu0 0
    %852 = vmatpush1.bf16.msra.mxu0 0
    %853 = vmatprep.subr.bf16.mxu0 0
    %854 = vmatpush1.bf16.msra.mxu0 0
    %855 = vmatprep.subr.bf16.mxu0 0
    %856 = vmatpush1.bf16.msra.mxu0 0
    %857 = vmatprep.subr.bf16.mxu0 0
    %858 = vmatpush1.bf16.msra.mxu0 0
    %859 = vmatprep.subr.bf16.mxu0 0
    %860 = vmatpush1.bf16.msra.mxu0 0
    %861 = vmatprep.mubr.bf16.mxu0 0
    %862 = vmatmul.mubr.bf16.gmra.mrb[0].mxu0 %v757
    %v863 = vpop.f32.mrb[0].mxu0
    %v864 = vadd.f32 0.0, %v863
    %v865 = vpop.f32.mrb[0].mxu0
    %v866 = vpop.f32.mrb[0].mxu0
    %v867 = vadd.f32 0.0, %v866
    %v868 = vpop.f32.mrb[0].mxu0
    %869 = vmatprep.mubr.bf16.mxu0 0
    %870 = vmatmul.mubr.bf16.gmra.mrb[0].mxu0 %v758
    %v871 = vpop.f32.mrb[0].mxu0
    %v872 = vadd.f32 0.0, %v871
    %v873 = vpop.f32.mrb[0].mxu0
    %v874 = vpop.f32.mrb[0].mxu0
    %v875 = vadd.f32 0.0, %v874
    %v876 = vpop.f32.mrb[0].mxu0
    %877 = vmatprep.mubr.bf16.mxu0 0
    %878 = vmatmul.mubr.bf16.gmra.mrb[0].mxu0 %v759
    %v879 = vpop.f32.mrb[0].mxu0
    %v880 = vadd.f32 0.0, %v879
    %v881 = vpop.f32.mrb[0].mxu0
    %v882 = vpop.f32.mrb[0].mxu0
    %v883 = vadd.f32 0.0, %v882
    %v884 = vpop.f32.mrb[0].mxu0
    %885 = vmatprep.mubr.bf16.mxu0 0
    %886 = vmatmul.mubr.bf16.gmra.mrb[0].mxu0 %v760
    %v887 = vpop.f32.mrb[0].mxu0
    %v888 = vadd.f32 0.0, %v887
    %v889 = vpop.f32.mrb[0].mxu0
    %v890 = vpop.f32.mrb[0].mxu0
    %v891 = vadd.f32 0.0, %v890
    %v892 = vpop.f32.mrb[0].mxu0
    %893 = vmatprep.mubr.bf16.mxu0 0
    %894 = vmatmul.mubr.bf16.gmra.mrb[0].mxu0 %v761
    %v895 = vpop.f32.mrb[0].mxu0
    %v896 = vadd.f32 0.0, %v895
    %v897 = vpop.f32.mrb[0].mxu0
    %v898 = vpop.f32.mrb[0].mxu0
    %v899 = vadd.f32 0.0, %v898
    %v900 = vpop.f32.mrb[0].mxu0
    %901 = vmatprep.mubr.bf16.mxu0 0
    %902 = vmatmul.mubr.bf16.gmra.mrb[0].mxu0 %v762
    %v903 = vpop.f32.mrb[0].mxu0
    %v904 = vadd.f32 0.0, %v903
    %v905 = vpop.f32.mrb[0].mxu0
    %v906 = vpop.f32.mrb[0].mxu0
    %v907 = vadd.f32 0.0, %v906
    %v908 = vpop.f32.mrb[0].mxu0
    %909 = vmatprep.mubr.bf16.mxu0 0
    %910 = vmatmul.mubr.bf16.gmra.mrb[0].mxu0 %v763
    %v911 = vpop.f32.mrb[0].mxu0
    %v912 = vadd.f32 0.0, %v911
    %v913 = vpop.f32.mrb[0].mxu0
    %v914 = vpop.f32.mrb[0].mxu0
    %v915 = vadd.f32 0.0, %v914
    %v916 = vpop.f32.mrb[0].mxu0
    %917 = vmatprep.mubr.bf16.mxu0 0
    %918 = vmatmul.mubr.bf16.gmra.mrb[0].mxu0 %v764
    %v919 = vpop.f32.mrb[0].mxu0
    %v920 = vadd.f32 0.0, %v919
    %v921 = vpop.f32.mrb[0].mxu0
    %v922 = vpop.f32.mrb[0].mxu0
    %v923 = vadd.f32 0.0, %v922
    %v924 = vpop.f32.mrb[0].mxu0
    %925 = vdwg.mxu0
    %v926 = vpack.c.bf16 %v867, %v864
    %v927 = vpack.c.bf16 %v875, %v872
    %v928 = vpack.c.bf16 %v883, %v880
    %v929 = vpack.c.bf16 %v891, %v888
    %v930 = vpack.c.bf16 %v899, %v896
    %v931 = vpack.c.bf16 %v907, %v904
    %v932 = vpack.c.bf16 %v915, %v912
    %v933 = vpack.c.bf16 %v923, %v920
    %v934 = vld [vmem:[%s7] sm:$0x1]
    %v936 = vlaneseq
    %v937 = vshrl.u32 %v936, 7
    %v938 = vsub.s32 0, %v937
    %v939 = vrot.slane %v934, %v938
    %941 = vmatprep.subr.bf16.mxu0 0
    %942 = vmatpush1.bf16.msra.mxu0 %v926
    %943 = vmatprep.subr.bf16.mxu0 0
    %944 = vmatpush1.bf16.msra.mxu0 %v927
    %945 = vmatprep.subr.bf16.mxu0 0
    %946 = vmatpush1.bf16.msra.mxu0 %v928
    %947 = vmatprep.subr.bf16.mxu0 0
    %948 = vmatpush1.bf16.msra.mxu0 %v929
    %949 = vmatprep.subr.bf16.mxu0 0
    %950 = vmatpush1.bf16.msra.mxu0 %v930
    %951 = vmatprep.subr.bf16.mxu0 0
    %952 = vmatpush1.bf16.msra.mxu0 %v931
    %953 = vmatprep.subr.bf16.mxu0 0
    %954 = vmatpush1.bf16.msra.mxu0 %v932
    %955 = vmatprep.subr.bf16.mxu0 0
    %956 = vmatpush1.bf16.msra.mxu0 %v933
    %957 = vmatprep.subr.bf16.mxu0 0
    %958 = vmatpush1.bf16.msra.mxu0 0
    %959 = vmatprep.subr.bf16.mxu0 0
    %960 = vmatpush1.bf16.msra.mxu0 0
    %961 = vmatprep.subr.bf16.mxu0 0
    %962 = vmatpush1.bf16.msra.mxu0 0
    %963 = vmatprep.subr.bf16.mxu0 0
    %964 = vmatpush1.bf16.msra.mxu0 0
    %965 = vmatprep.subr.bf16.mxu0 0
    %966 = vmatpush1.bf16.msra.mxu0 0
    %967 = vmatprep.subr.bf16.mxu0 0
    %968 = vmatpush1.bf16.msra.mxu0 0
    %969 = vmatprep.subr.bf16.mxu0 0
    %970 = vmatpush1.bf16.msra.mxu0 0
    %971 = vmatprep.subr.bf16.mxu0 0
    %972 = vmatpush1.bf16.msra.mxu0 0
    %973 = vmatprep.mubr.bf16.mxu0 0
    %974 = vmatmul.mubr.bf16.gmra.mrb[0].mxu0 %v332
    %v975 = vpop.f32.mrb[0].mxu0
    %v976 = vadd.f32 %v939, %v975
    %v977 = vpop.f32.mrb[0].mxu0
    %v978 = vpop.f32.mrb[0].mxu0
    %v979 = vadd.f32 %v939, %v978
    %v980 = vpop.f32.mrb[0].mxu0
    %981 = vmatprep.mubr.bf16.mxu0 0
    %982 = vmatmul.mubr.bf16.gmra.mrb[0].mxu0 %v333
    %v983 = vpop.f32.mrb[0].mxu0
    %v984 = vadd.f32 %v939, %v983
    %v985 = vpop.f32.mrb[0].mxu0
    %v986 = vpop.f32.mrb[0].mxu0
    %v987 = vadd.f32 %v939, %v986
    %v988 = vpop.f32.mrb[0].mxu0
    %989 = vmatprep.mubr.bf16.mxu0 0
    %990 = vmatmul.mubr.bf16.gmra.mrb[0].mxu0 %v334
    %v991 = vpop.f32.mrb[0].mxu0
    %v992 = vadd.f32 %v939, %v991
    %v993 = vpop.f32.mrb[0].mxu0
    %v994 = vpop.f32.mrb[0].mxu0
    %v995 = vadd.f32 %v939, %v994
    %v996 = vpop.f32.mrb[0].mxu0
    %997 = vmatprep.mubr.bf16.mxu0 0
    %998 = vmatmul.mubr.bf16.gmra.mrb[0].mxu0 %v335
    %v999 = vpop.f32.mrb[0].mxu0
    %v1000 = vadd.f32 %v939, %v999
    %v1001 = vpop.f32.mrb[0].mxu0
    %v1002 = vpop.f32.mrb[0].mxu0
    %v1003 = vadd.f32 %v939, %v1002
    %v1004 = vpop.f32.mrb[0].mxu0
    %1005 = vmatprep.mubr.bf16.mxu0 0
    %1006 = vmatmul.mubr.bf16.gmra.mrb[0].mxu0 %v336
    %v1007 = vpop.f32.mrb[0].mxu0
    %v1008 = vadd.f32 %v939, %v1007
    %v1009 = vpop.f32.mrb[0].mxu0
    %v1010 = vpop.f32.mrb[0].mxu0
    %v1011 = vadd.f32 %v939, %v1010
    %v1012 = vpop.f32.mrb[0].mxu0
    %1013 = vmatprep.mubr.bf16.mxu0 0
    %1014 = vmatmul.mubr.bf16.gmra.mrb[0].mxu0 %v337
    %v1015 = vpop.f32.mrb[0].mxu0
    %v1016 = vadd.f32 %v939, %v1015
    %v1017 = vpop.f32.mrb[0].mxu0
    %v1018 = vpop.f32.mrb[0].mxu0
    %v1019 = vadd.f32 %v939, %v1018
    %v1020 = vpop.f32.mrb[0].mxu0
    %1021 = vmatprep.mubr.bf16.mxu0 0
    %1022 = vmatmul.mubr.bf16.gmra.mrb[0].mxu0 %v338
    %v1023 = vpop.f32.mrb[0].mxu0
    %v1024 = vadd.f32 %v939, %v1023
    %v1025 = vpop.f32.mrb[0].mxu0
    %v1026 = vpop.f32.mrb[0].mxu0
    %v1027 = vadd.f32 %v939, %v1026
    %v1028 = vpop.f32.mrb[0].mxu0
    %1029 = vmatprep.mubr.bf16.mxu0 0
    %1030 = vmatmul.mubr.bf16.gmra.mrb[0].mxu0 %v339
    %v1031 = vpop.f32.mrb[0].mxu0
    %v1032 = vadd.f32 %v939, %v1031
    %v1033 = vpop.f32.mrb[0].mxu0
    %v1034 = vpop.f32.mrb[0].mxu0
    %v1035 = vadd.f32 %v939, %v1034
    %v1036 = vpop.f32.mrb[0].mxu0
    %1037 = vdwg.mxu0
    %v1038 = vlaneseq
    %v1039 = vand.u32 %v1038, 127
    %vm1040 = vcmp.lt.s32.totalorder %v1039, 8
    %v1041 = vsel %vm1040, %v976, -1e+30
    %v1042 = vsel %vm1040, %v979, -1e+30
    %v1043 = vsel %vm1040, %v984, -1e+30
    %v1044 = vsel %vm1040, %v987, -1e+30
    %v1045 = vsel %vm1040, %v992, -1e+30
    %v1046 = vsel %vm1040, %v995, -1e+30
    %v1047 = vsel %vm1040, %v1000, -1e+30
    %v1048 = vsel %vm1040, %v1003, -1e+30
    %v1049 = vsel %vm1040, %v1008, -1e+30
    %v1050 = vsel %vm1040, %v1011, -1e+30
    %v1051 = vsel %vm1040, %v1016, -1e+30
    %v1052 = vsel %vm1040, %v1019, -1e+30
    %v1053 = vsel %vm1040, %v1024, -1e+30
    %v1054 = vsel %vm1040, %v1027, -1e+30
    %v1055 = vsel %vm1040, %v1032, -1e+30
    %v1056 = vsel %vm1040, %v1035, -1e+30
    %1057 = vmax.xlane.f32.xlu0 %v1041
    %v1058 = vpop.xlane.xlu0 %1057
    %1059 = vmax.xlane.f32.xlu0 %v1042
    %v1060 = vpop.xlane.xlu0 %1059
    %1061 = vmax.xlane.f32.xlu0 %v1043
    %v1062 = vpop.xlane.xlu0 %1061
    %1063 = vmax.xlane.f32.xlu0 %v1044
    %v1064 = vpop.xlane.xlu0 %1063
    %1065 = vmax.xlane.f32.xlu0 %v1045
    %v1066 = vpop.xlane.xlu0 %1065
    %1067 = vmax.xlane.f32.xlu0 %v1046
    %v1068 = vpop.xlane.xlu0 %1067
    %1069 = vmax.xlane.f32.xlu0 %v1047
    %v1070 = vpop.xlane.xlu0 %1069
    %1071 = vmax.xlane.f32.xlu0 %v1048
    %v1072 = vpop.xlane.xlu0 %1071
    %1073 = vmax.xlane.f32.xlu0 %v1049
    %v1074 = vpop.xlane.xlu0 %1073
    %1075 = vmax.xlane.f32.xlu0 %v1050
    %v1076 = vpop.xlane.xlu0 %1075
    %1077 = vmax.xlane.f32.xlu0 %v1051
    %v1078 = vpop.xlane.xlu0 %1077
    %1079 = vmax.xlane.f32.xlu0 %v1052
    %v1080 = vpop.xlane.xlu0 %1079
    %1081 = vmax.xlane.f32.xlu0 %v1053
    %v1082 = vpop.xlane.xlu0 %1081
    %1083 = vmax.xlane.f32.xlu0 %v1054
    %v1084 = vpop.xlane.xlu0 %1083
    %1085 = vmax.xlane.f32.xlu0 %v1055
    %v1086 = vpop.xlane.xlu0 %1085
    %1087 = vmax.xlane.f32.xlu0 %v1056
    %v1088 = vpop.xlane.xlu0 %1087
    %v1089 = vsub.f32 %v1041, %v1058
    %v1090 = vsub.f32 %v1042, %v1060
    %v1091 = vsub.f32 %v1043, %v1062
    %v1092 = vsub.f32 %v1044, %v1064
    %v1093 = vsub.f32 %v1045, %v1066
    %v1094 = vsub.f32 %v1046, %v1068
    %v1095 = vsub.f32 %v1047, %v1070
    %v1096 = vsub.f32 %v1048, %v1072
    %v1097 = vsub.f32 %v1049, %v1074
    %v1098 = vsub.f32 %v1050, %v1076
    %v1099 = vsub.f32 %v1051, %v1078
    %v1100 = vsub.f32 %v1052, %v1080
    %v1101 = vsub.f32 %v1053, %v1082
    %v1102 = vsub.f32 %v1054, %v1084
    %v1103 = vsub.f32 %v1055, %v1086
    %v1104 = vsub.f32 %v1056, %v1088
    %v1105 = vmul.f32 %v1089, 1.442695
    %v1106 = vpow.pop %v1105
    %v1107 = vmul.f32 %v1090, 1.442695
    %v1108 = vpow.pop %v1107
    %v1109 = vmul.f32 %v1091, 1.442695
    %v1110 = vpow.pop %v1109
    %v1111 = vmul.f32 %v1092, 1.442695
    %v1112 = vpow.pop %v1111
    %v1113 = vmul.f32 %v1093, 1.442695
    %v1114 = vpow.pop %v1113
    %v1115 = vmul.f32 %v1094, 1.442695
    %v1116 = vpow.pop %v1115
    %v1117 = vmul.f32 %v1095, 1.442695
    %v1118 = vpow.pop %v1117
    %v1119 = vmul.f32 %v1096, 1.442695
    %v1120 = vpow.pop %v1119
    %v1121 = vmul.f32 %v1097, 1.442695
    %v1122 = vpow.pop %v1121
    %v1123 = vmul.f32 %v1098, 1.442695
    %v1124 = vpow.pop %v1123
    %v1125 = vmul.f32 %v1099, 1.442695
    %v1126 = vpow.pop %v1125
    %v1127 = vmul.f32 %v1100, 1.442695
    %v1128 = vpow.pop %v1127
    %v1129 = vmul.f32 %v1101, 1.442695
    %v1130 = vpow.pop %v1129
    %v1131 = vmul.f32 %v1102, 1.442695
    %v1132 = vpow.pop %v1131
    %v1133 = vmul.f32 %v1103, 1.442695
    %v1134 = vpow.pop %v1133
    %v1135 = vmul.f32 %v1104, 1.442695
    %v1136 = vpow.pop %v1135
    %v1137 = vsel %vm1040, %v1106, 0.0
    %v1138 = vsel %vm1040, %v1108, 0.0
    %v1139 = vsel %vm1040, %v1110, 0.0
    %v1140 = vsel %vm1040, %v1112, 0.0
    %v1141 = vsel %vm1040, %v1114, 0.0
    %v1142 = vsel %vm1040, %v1116, 0.0
    %v1143 = vsel %vm1040, %v1118, 0.0
    %v1144 = vsel %vm1040, %v1120, 0.0
    %v1145 = vsel %vm1040, %v1122, 0.0
    %v1146 = vsel %vm1040, %v1124, 0.0
    %v1147 = vsel %vm1040, %v1126, 0.0
    %v1148 = vsel %vm1040, %v1128, 0.0
    %v1149 = vsel %vm1040, %v1130, 0.0
    %v1150 = vsel %vm1040, %v1132, 0.0
    %v1151 = vsel %vm1040, %v1134, 0.0
    %v1152 = vsel %vm1040, %v1136, 0.0
    %1153 = vadd.xlane.f32.xlu0 %v1137
    %v1154 = vpop.xlane.xlu0 %1153
    %1155 = vadd.xlane.f32.xlu0 %v1138
    %v1156 = vpop.xlane.xlu0 %1155
    %1157 = vadd.xlane.f32.xlu0 %v1139
    %v1158 = vpop.xlane.xlu0 %1157
    %1159 = vadd.xlane.f32.xlu0 %v1140
    %v1160 = vpop.xlane.xlu0 %1159
    %1161 = vadd.xlane.f32.xlu0 %v1141
    %v1162 = vpop.xlane.xlu0 %1161
    %1163 = vadd.xlane.f32.xlu0 %v1142
    %v1164 = vpop.xlane.xlu0 %1163
    %1165 = vadd.xlane.f32.xlu0 %v1143
    %v1166 = vpop.xlane.xlu0 %1165
    %1167 = vadd.xlane.f32.xlu0 %v1144
    %v1168 = vpop.xlane.xlu0 %1167
    %1169 = vadd.xlane.f32.xlu0 %v1145
    %v1170 = vpop.xlane.xlu0 %1169
    %1171 = vadd.xlane.f32.xlu0 %v1146
    %v1172 = vpop.xlane.xlu0 %1171
    %1173 = vadd.xlane.f32.xlu0 %v1147
    %v1174 = vpop.xlane.xlu0 %1173
    %1175 = vadd.xlane.f32.xlu0 %v1148
    %v1176 = vpop.xlane.xlu0 %1175
    %1177 = vadd.xlane.f32.xlu0 %v1149
    %v1178 = vpop.xlane.xlu0 %1177
    %1179 = vadd.xlane.f32.xlu0 %v1150
    %v1180 = vpop.xlane.xlu0 %1179
    %1181 = vadd.xlane.f32.xlu0 %v1151
    %v1182 = vpop.xlane.xlu0 %1181
    %1183 = vadd.xlane.f32.xlu0 %v1152
    %v1184 = vpop.xlane.xlu0 %1183
    %v1185 = vlog2.pop %v1154
    %v1186 = vmul.f32 %v1185, 0.6931472
    %v1187 = vlog2.pop %v1156
    %v1188 = vmul.f32 %v1187, 0.6931472
    %v1189 = vlog2.pop %v1158
    %v1190 = vmul.f32 %v1189, 0.6931472
    %v1191 = vlog2.pop %v1160
    %v1192 = vmul.f32 %v1191, 0.6931472
    %v1193 = vlog2.pop %v1162
    %v1194 = vmul.f32 %v1193, 0.6931472
    %v1195 = vlog2.pop %v1164
    %v1196 = vmul.f32 %v1195, 0.6931472
    %v1197 = vlog2.pop %v1166
    %v1198 = vmul.f32 %v1197, 0.6931472
    %v1199 = vlog2.pop %v1168
    %v1200 = vmul.f32 %v1199, 0.6931472
    %v1201 = vlog2.pop %v1170
    %v1202 = vmul.f32 %v1201, 0.6931472
    %v1203 = vlog2.pop %v1172
    %v1204 = vmul.f32 %v1203, 0.6931472
    %v1205 = vlog2.pop %v1174
    %v1206 = vmul.f32 %v1205, 0.6931472
    %v1207 = vlog2.pop %v1176
    %v1208 = vmul.f32 %v1207, 0.6931472
    %v1209 = vlog2.pop %v1178
    %v1210 = vmul.f32 %v1209, 0.6931472
    %v1211 = vlog2.pop %v1180
    %v1212 = vmul.f32 %v1211, 0.6931472
    %v1213 = vlog2.pop %v1182
    %v1214 = vmul.f32 %v1213, 0.6931472
    %v1215 = vlog2.pop %v1184
    %v1216 = vmul.f32 %v1215, 0.6931472
    %v1217 = vsub.f32 %v1089, %v1186
    %v1218 = vsub.f32 %v1090, %v1188
    %v1219 = vsub.f32 %v1091, %v1190
    %v1220 = vsub.f32 %v1092, %v1192
    %v1221 = vsub.f32 %v1093, %v1194
    %v1222 = vsub.f32 %v1094, %v1196
    %v1223 = vsub.f32 %v1095, %v1198
    %v1224 = vsub.f32 %v1096, %v1200
    %v1225 = vsub.f32 %v1097, %v1202
    %v1226 = vsub.f32 %v1098, %v1204
    %v1227 = vsub.f32 %v1099, %v1206
    %v1228 = vsub.f32 %v1100, %v1208
    %v1229 = vsub.f32 %v1101, %v1210
    %v1230 = vsub.f32 %v1102, %v1212
    %v1231 = vsub.f32 %v1103, %v1214
    %v1232 = vsub.f32 %v1104, %v1216
    %1233 = vst [vmem:[#allocation12] sm:$0xff] %v1217
    %1234 = vst [vmem:[#allocation12 + $0x8] sm:$0xff] %v1218
    %1235 = vst [vmem:[#allocation12 + $0x10] sm:$0xff] %v1219
    %1236 = vst [vmem:[#allocation12 + $0x18] sm:$0xff] %v1220
    %1237 = vst [vmem:[#allocation12 + $0x20] sm:$0xff] %v1221
    %1238 = vst [vmem:[#allocation12 + $0x28] sm:$0xff] %v1222
    %1239 = vst [vmem:[#allocation12 + $0x30] sm:$0xff] %v1223
    %1240 = vst [vmem:[#allocation12 + $0x38] sm:$0xff] %v1224
    %1241 = vst [vmem:[#allocation12 + $0x40] sm:$0xff] %v1225
    %1242 = vst [vmem:[#allocation12 + $0x48] sm:$0xff] %v1226
    %1243 = vst [vmem:[#allocation12 + $0x50] sm:$0xff] %v1227
    %1244 = vst [vmem:[#allocation12 + $0x58] sm:$0xff] %v1228
    %1245 = vst [vmem:[#allocation12 + $0x60] sm:$0xff] %v1229
    %1246 = vst [vmem:[#allocation12 + $0x68] sm:$0xff] %v1230
    %1247 = vst [vmem:[#allocation12 + $0x70] sm:$0xff] %v1231
    %1248 = vst [vmem:[#allocation12 + $0x78] sm:$0xff] %v1232
    // Predicated region
    $region50: #{tpu_custom_call.1} parent=1 // pred_check
      _
    $region51: #{tpu_custom_call.1} parent=1 // pred_check_branch
      %1250 = sbr.rel (0) target = $region53
    $region52: #{tpu_custom_call.1} parent=1 // pred_region
      %s1252 = ssub.s32 2048, 2048
      %1253 = vsyncadd [#allocation6], %s1252
      %s1254 = sshll.u32 [#allocation12], 4
      %s1255 = int_to_ptr.vmem [resolvable:$true] %s1254
      %1260 = dma.vmem_to_hbm [thread:$0]  %s1255, 2048, %s8, [#allocation6], 128, 128, 8
    $region53: #{tpu_custom_call.1} parent=1 // pred_fallthru
      _
    // Predicated region
    $region54: #{tpu_custom_call.1} parent=1 // pred_check
      _
    $region55: #{tpu_custom_call.1} parent=1 // pred_check_branch
      %1262 = sbr.rel (0) target = $region57
    $region56: #{tpu_custom_call.1} parent=1 // pred_region
      %1263 = dma.done [#allocation6], 2048
    $region57: #{tpu_custom_call.1} parent=1 // pred_fallthru
      _
    %1264 = vsyncpa [#allocation5], 1
    %1265 = vsyncpa [#allocation8], 1
    %1266 = vsyncpa [#allocation11], 1
    %1267 = vsyncpa [#allocation6], 1
  %1268 = vsyncmov [#allocation3]
  %s1269 = vpop.sfrf %1268
  %p1270 = scmp.eq.s32.totalorder %s1269, 0
  %p1271 = pneg %p1270
  %1273 = shalt.err (%p1271)

</llo_original>
